<compile_context>
chip_gen: v5e
topology: v5e:2x2
jax: 0.10.0
libtpu: 0.0.40
codegen_flags: <defaults>
</compile_context>

<pallas_src>
import functools

import jax
import jax.numpy as jnp
from jax import lax
from jax.experimental import pallas as pl
from jax.experimental.pallas import tpu as pltpu


def _round_up(x, m):
    return ((x + m - 1) // m) * m


def _sine_layer_kernel(x_ref, wt_ref, b_ref, o_ref, *, omega_0):
    # x_ref: (TB, in)  wt_ref: (in, out)  b_ref: (1, out)  o_ref: (TB, out)
    z = jnp.dot(
        x_ref[...], wt_ref[...],
        preferred_element_type=jnp.float32,       # MXU, f32 accumulate
        precision=lax.Precision.HIGHEST,          # f32 parity with torch Linear
    )
    z = z + b_ref[...].astype(jnp.float32)        # bias broadcast (VPU)
    o_ref[...] = jnp.sin(omega_0 * z).astype(o_ref.dtype)   # scale (VPU) + sin


def sine_layer(x, weight, bias, omega_0=30.0, *, block_batch=1024,
               min_grid_steps=4, out_dtype=None):
    """SIREN SineLayer forward.

    x: (B, in); weight: (out, in) (nn.Linear layout); bias: (out,).
    out_dtype: output dtype (default x.dtype); pass bf16 to halve write traffic.
    """
    B, in_features = x.shape
    out_features = weight.shape[0]
    if out_dtype is None:
        out_dtype = x.dtype

    # One-time (per-call) transpose to (in, out): trivial next to the per-call
    # weight DMA, removes any per-grid-step transpose of the resident weight.
    wt = weight.T
    b2d = bias.reshape(1, out_features)

    # Batch tile: multiple of 8 sublanes, aim for >= min_grid_steps grid steps
    # (v7x megacore needs >1 tile on the "parallel" axis), cap at block_batch.
    tb = min(block_batch, _round_up(pl.cdiv(B, min_grid_steps), 8))
    tb = max(tb, 8)

    # VMEM guard (v7x: 32 MiB scoped default / 64 MiB physical).
    x_item = jnp.dtype(x.dtype).itemsize
    o_item = jnp.dtype(out_dtype).itemsize
    w_item = jnp.dtype(wt.dtype).itemsize
    w_bytes = 2 * in_features * out_features * w_item   # default double-buffered
    tile_bytes = lambda t: 2 * t * (in_features * x_item + out_features * o_item)
    budget = 24 * 1024 * 1024
    while tb > 8 and tile_bytes(tb) + w_bytes > budget:
        tb = max(8, _round_up(tb // 2, 8))
    vmem_est = tile_bytes(tb) + w_bytes + 2 * out_features * jnp.dtype(bias.dtype).itemsize
    vmem_limit = None
    if vmem_est > 12 * 1024 * 1024:   # leave headroom above v5e's scoped default
        vmem_limit = min(int(vmem_est * 5 // 4) + (1 << 20), 48 * 1024 * 1024)

    n_steps = pl.cdiv(B, tb)
    kernel = functools.partial(_sine_layer_kernel, omega_0=float(omega_0))

    cost = pl.CostEstimate(
        flops=2 * B * in_features * out_features,
        transcendentals=B * out_features,
        bytes_accessed=(B * in_features * x_item
                        + in_features * out_features * w_item
                        + out_features * jnp.dtype(bias.dtype).itemsize
                        + B * out_features * o_item),
    )

    return pl.pallas_call(
        kernel,
        out_shape=jax.ShapeDtypeStruct((B, out_features), out_dtype),
        grid_spec=pltpu.PrefetchScalarGridSpec(
            num_scalar_prefetch=0,
            grid=(n_steps,),
            in_specs=[
                # x: tiled along batch; trailing block may be partial — only
                # in-bounds output rows are written back.
                pl.BlockSpec((tb, in_features), lambda i: (i, 0)),
                # weight (in, out): same block every step => VMEM-resident.
                pl.BlockSpec((in_features, out_features), lambda i: (0, 0)),
                # bias: VMEM-resident.
                pl.BlockSpec((1, out_features), lambda i: (0, 0)),
            ],
            out_specs=pl.BlockSpec((tb, out_features), lambda i: (i, 0)),
        ),
        compiler_params=pltpu.CompilerParams(
            dimension_semantics=("parallel",),   # shard batch tiles across TCs (v7x)
            vmem_limit_bytes=vmem_limit,
        ),
        cost_estimate=cost,
    )(x, wt, b2d)


def init_sine_layer_params(key, in_features, out_features, is_first=True,
                           omega_0=30.0):
    """Deterministic init matching SineLayer.init_weights + nn.Linear bias init."""
    kw, kb = jax.random.split(key)
    if is_first:
        bound_w = 1.0 / in_features
    else:
        bound_w = float(jnp.sqrt(6.0 / in_features) / omega_0)
    weight = jax.random.uniform(
        kw, (out_features, in_features), jnp.float32,
        minval=-bound_w, maxval=bound_w)
    bound_b = 1.0 / float(jnp.sqrt(jnp.float32(in_features)))
    bias = jax.random.uniform(
        kb, (out_features,), jnp.float32, minval=-bound_b, maxval=bound_b)
    return weight, bias


if __name__ == "__main__":
    key = jax.random.PRNGKey(0)
    k_in1, k_p1, k_in2, k_p2 = jax.random.split(key, 4)
    omega_0 = 30.0

    # Case 1: first SIREN layer (3 coords -> 32 feats). B=200 is not a
    # multiple of the tile => exercises the partial trailing block (no pad).
    B1, in1, out1 = 200, 3, 32
    x1 = jax.random.uniform(k_in1, (B1, in1), jnp.float32, minval=-1.0, maxval=1.0)
    w1, b1 = init_sine_layer_params(k_p1, in1, out1, is_first=True, omega_0=omega_0)
    y1 = jax.block_until_ready(sine_layer(x1, w1, b1, omega_0=omega_0))
    ref1 = jnp.sin(omega_0 * (jnp.dot(x1, w1.T, precision=lax.Precision.HIGHEST) + b1))
    assert y1.shape == (B1, out1)
    assert jnp.allclose(y1, ref1, atol=1e-4, rtol=1e-4)

    # Case 2: hidden SIREN layer (256 -> 256, lane-dense output), multi-step
    # grid with the weight resident in VMEM across steps.
    B2, in2, out2 = 128, 256, 256
    x2 = jax.random.uniform(k_in2, (B2, in2), jnp.float32, minval=-1.0, maxval=1.0)
    w2, b2 = init_sine_layer_params(k_p2, in2, out2, is_first=False, omega_0=omega_0)
    y2 = jax.block_until_ready(sine_layer(x2, w2, b2, omega_0=omega_0))
    ref2 = jnp.sin(omega_0 * (jnp.dot(x2, w2.T, precision=lax.Precision.HIGHEST) + b2))
    assert y2.shape == (B2, out2)
    assert jnp.allclose(y2, ref2, atol=1e-4, rtol=1e-4)

    # Case 3: bf16 activation path (halved traffic; f32 MXU accumulate kept).
    y3 = jax.block_until_ready(
        sine_layer(x2.astype(jnp.bfloat16), w2.astype(jnp.bfloat16),
                   b2.astype(jnp.bfloat16), omega_0=omega_0,
                   out_dtype=jnp.bfloat16))
    assert y3.shape == (B2, out2) and y3.dtype == jnp.bfloat16
    assert jnp.allclose(y3.astype(jnp.float32), ref2, atol=5e-2, rtol=5e-2)

    print("KERNEL_OK")
</pallas_src>

<mosaic_0001>
module attributes {stable_mosaic.version = 11 : i64} {
  func.func @_sine_layer_kernel(%arg0: i32, %arg1: memref<56x3xf32, #tpu.memory_space<vmem>>, %arg2: memref<3x32xf32, #tpu.memory_space<vmem>>, %arg3: memref<1x32xf32, #tpu.memory_space<vmem>>, %arg4: memref<56x32xf32, #tpu.memory_space<vmem>>) attributes {dimension_semantics = [#tpu.dimension_semantics<parallel>], iteration_bounds = array<i64: 4>, scalar_prefetch = 0 : i64, scratch_operands = 0 : i64, tpu.core_type = #tpu.core_type<tc>, window_params = [{transform_indices = @transform_0, window_bounds = array<i64: 56, 3>}, {pipeline_mode = #tpu.pipeline_mode<synchronous>, transform_indices = @transform_1, window_bounds = array<i64: 3, 32>}, {pipeline_mode = #tpu.pipeline_mode<synchronous>, transform_indices = @transform_2, window_bounds = array<i64: 1, 32>}, {transform_indices = @transform_3, window_bounds = array<i64: 56, 32>}]} {
    %c0 = arith.constant 0 : index
    %c0_0 = arith.constant 0 : index
    %0 = vector.load %arg1[%c0, %c0_0] : memref<56x3xf32, #tpu.memory_space<vmem>>, vector<56x3xf32>
    %c0_1 = arith.constant 0 : index
    %c0_2 = arith.constant 0 : index
    %1 = vector.load %arg2[%c0_1, %c0_2] : memref<3x32xf32, #tpu.memory_space<vmem>>, vector<3x32xf32>
    %cst = arith.constant dense<0.000000e+00> : vector<56x32xf32>
    %2 = tpu.matmul %0, %1, %cst {dimension_numbers = #tpu.dot_dimension_numbers<[1], [0], [0], [1], [0, 0, 1, 1], [], []>, precision = #tpu.contract_precision<fp32>} : vector<56x3xf32>, vector<3x32xf32>, vector<56x32xf32> -> vector<56x32xf32>
    %c0_3 = arith.constant 0 : index
    %c0_4 = arith.constant 0 : index
    %3 = vector.load %arg3[%c0_3, %c0_4] : memref<1x32xf32, #tpu.memory_space<vmem>>, vector<1x32xf32>
    %4 = vector.broadcast %3 : vector<1x32xf32> to vector<56x32xf32>
    %5 = arith.addf %2, %4 : vector<56x32xf32>
    %cst_5 = arith.constant 3.000000e+01 : f32
    %6 = vector.broadcast %cst_5 : f32 to vector<56x32xf32>
    %7 = arith.mulf %6, %5 : vector<56x32xf32>
    %8 = math.sin %7 : vector<56x32xf32>
    %c0_6 = arith.constant 0 : index
    %c0_7 = arith.constant 0 : index
    %9 = vector.load %arg4[%c0_6, %c0_7] : memref<56x32xf32, #tpu.memory_space<vmem>>, vector<56x32xf32>
    tpu.vector_store %arg4[%c0_6, %c0_7], %8 {strides = array<i32>} : memref<56x32xf32, #tpu.memory_space<vmem>>, vector<56x32xf32>,
    return
  }
  func.func @transform_0(%arg0: i32) -> (i32, i32) {
    %c0_i32 = arith.constant 0 : i32
    %c0_i32_0 = arith.constant 0 : i32
    return %arg0, %c0_i32 : i32, i32
  }
  func.func @transform_1(%arg0: i32) -> (i32, i32) {
    %c0_i32 = arith.constant 0 : i32
    %c0_i32_0 = arith.constant 0 : i32
    %c0_i32_1 = arith.constant 0 : i32
    return %c0_i32, %c0_i32_0 : i32, i32
  }
  func.func @transform_2(%arg0: i32) -> (i32, i32) {
    %c0_i32 = arith.constant 0 : i32
    %c0_i32_0 = arith.constant 0 : i32
    %c0_i32_1 = arith.constant 0 : i32
    return %c0_i32, %c0_i32_0 : i32, i32
  }
  func.func @transform_3(%arg0: i32) -> (i32, i32) {
    %c0_i32 = arith.constant 0 : i32
    %c0_i32_0 = arith.constant 0 : i32
    return %arg0, %c0_i32 : i32, i32
  }
}

</mosaic_0001>

<llo_original>
// kernel: tpu_custom_call.1
$region0: #{tpu_custom_call.1}
  #allocation0 [shape = 'u32[]', space=smem, size = 0x4, offset = 0x4, fixed_abs, tag = 'smem constant byte address 0x4 - core index']
  #allocation1 [shape = 'u32[72,128]{1,0:T(1,128)}', space=vmem, size = 0x9000, scoped, tag = 'internal scratch']
  %s0 = inlined_call_operand.vmem [shape: f32[200,3], index: 0, kind: input, shape index: {}]
  %s1 = inlined_call_operand.vmem [shape: f32[3,32], index: 1, kind: input, shape index: {}]
  %s2 = inlined_call_operand.vmem [shape: f32[1,32], index: 2, kind: input, shape index: {}]
  %s3 = inlined_call_operand.vmem [shape: f32[200,32], index: 3, kind: output, shape index: {}]
  %s4 = sld [smem:[#allocation0]]
  $region93: #{tpu_custom_call.1} parent=0
    _
  %s6 = ssub.s32 1, %s4
  %s7 = scalar_select 0, %s6, %s4
  $region1: #{tpu_custom_call.1} parent=0
    #allocation2 [shape = 'u8[57344]{0}', space=vmem, size = 0xe000, scoped, tag = 'output window, operand 0']
    loop: start=0, step=1, limit=6
    $region2: #{tpu_custom_call.1} parent=1 // loop_pre_header
      _
    $region3: #{tpu_custom_call.1} parent=1 // loop_header
      %s9 = sphi 0, %s13
      %p10 = scmp.ge.s32.totalorder %s9, 6
      %s19 = sphi 0, %s21
      %s22 = sphi 0, %s19
      %s23 = sphi 0, %s22
      %s39 = sphi 0, %s23
      %s43 = sphi 0, %s43
      %s45 = sphi 0, %s43
      %s46 = sphi 0, %s45
      %s60 = sphi 0, %s46
      %s64 = sphi 0, %s64
      %s66 = sphi 0, %s64
      %s67 = sphi 0, %s66
      %s81 = sphi 0, %s67
      %s87 = sphi 0, %s89
      %s90 = sphi 0, %s87
      %s91 = sphi 0, %s90
      %s107 = sphi 0, %s91
    $region4: #{tpu_custom_call.1} parent=1 // loop_header_branch
      %12 = sbr.rel (%p10) target = $region8
    $region5: #{tpu_custom_call.1} parent=1 // loop_body
      %s14 = ssub.s32 %s9, 1
      %s15 = ssub.s32 %s9, 2
      %s16 = sadd.s32 %s9, 1
      %s17 = ssub.s32 %s9, %s16
      %p18 = scmp.eq.s32.totalorder %s17, 0
      %s20 = sadd.s32 %s19, 1
      %s21 = scalar_select %p18, %s19, %s20
      %p24 = pneg %p18
      %p25 = scmp.eq.s32.totalorder %s9, 3
      %p26 = por %p24, %p25
      %p27 = scmp.ne.s32.totalorder %s19, %s22
      %p28 = scmp.eq.s32.totalorder %s9, 0
      %p29 = por %p27, %p28
      %p30 = scmp.ne.s32.totalorder %s19, %s22
      %p31 = scmp.eq.s32.totalorder %s14, 3
      %p32 = por %p30, %p31
      %p33 = scmp.ne.s32.totalorder %s22, %s23
      %p34 = scmp.eq.s32.totalorder %s14, 0
      %p35 = por %p33, %p34
      %p36 = scmp.ne.s32.totalorder %s22, %s23
      %p37 = scmp.eq.s32.totalorder %s15, 3
      %p38 = por %p36, %p37
      %p40 = scmp.ne.s32.totalorder %s23, %s39
      %p41 = scmp.eq.s32.totalorder %s15, 0
      %p42 = por %p40, %p41
      %s44 = sadd.s32 %s43, 1
      %p47 = scmp.eq.s32.totalorder %s9, 3
      %p48 = scmp.ne.s32.totalorder %s43, %s45
      %p49 = scmp.eq.s32.totalorder %s9, 0
      %p50 = por %p48, %p49
      %p51 = scmp.ne.s32.totalorder %s43, %s45
      %p52 = scmp.eq.s32.totalorder %s14, 3
      %p53 = por %p51, %p52
      %p54 = scmp.ne.s32.totalorder %s45, %s46
      %p55 = scmp.eq.s32.totalorder %s14, 0
      %p56 = por %p54, %p55
      %p57 = scmp.ne.s32.totalorder %s45, %s46
      %p58 = scmp.eq.s32.totalorder %s15, 3
      %p59 = por %p57, %p58
      %p61 = scmp.ne.s32.totalorder %s46, %s60
      %p62 = scmp.eq.s32.totalorder %s15, 0
      %p63 = por %p61, %p62
      %s65 = sadd.s32 %s64, 1
      %p68 = scmp.eq.s32.totalorder %s9, 3
      %p69 = scmp.ne.s32.totalorder %s64, %s66
      %p70 = scmp.eq.s32.totalorder %s9, 0
      %p71 = por %p69, %p70
      %p72 = scmp.ne.s32.totalorder %s64, %s66
      %p73 = scmp.eq.s32.totalorder %s14, 3
      %p74 = por %p72, %p73
      %p75 = scmp.ne.s32.totalorder %s66, %s67
      %p76 = scmp.eq.s32.totalorder %s14, 0
      %p77 = por %p75, %p76
      %p78 = scmp.ne.s32.totalorder %s66, %s67
      %p79 = scmp.eq.s32.totalorder %s15, 3
      %p80 = por %p78, %p79
      %p82 = scmp.ne.s32.totalorder %s67, %s81
      %p83 = scmp.eq.s32.totalorder %s15, 0
      %p84 = por %p82, %p83
      %s85 = ssub.s32 %s9, %s16
      %p86 = scmp.eq.s32.totalorder %s85, 0
      %s88 = sadd.s32 %s87, 1
      %s89 = scalar_select %p86, %s87, %s88
      %p92 = pneg %p86
      %p93 = scmp.eq.s32.totalorder %s9, 3
      %p94 = por %p92, %p93
      %p95 = scmp.ne.s32.totalorder %s87, %s90
      %p96 = scmp.eq.s32.totalorder %s9, 0
      %p97 = por %p95, %p96
      %p98 = scmp.ne.s32.totalorder %s87, %s90
      %p99 = scmp.eq.s32.totalorder %s14, 3
      %p100 = por %p98, %p99
      %p101 = scmp.ne.s32.totalorder %s90, %s91
      %p102 = scmp.eq.s32.totalorder %s14, 0
      %p103 = por %p101, %p102
      %p104 = scmp.ne.s32.totalorder %s90, %s91
      %p105 = scmp.eq.s32.totalorder %s15, 3
      %p106 = por %p104, %p105
      %p108 = scmp.ne.s32.totalorder %s91, %s107
      %p109 = scmp.eq.s32.totalorder %s15, 0
      %p110 = por %p108, %p109
      %p111 = scmp.le.s32.totalorder 1, %s9
      %p112 = scmp.lt.s32.totalorder %s9, 5
      %p113 = pnand %p111, %p112
      %p114 = pneg %p113
      // Predicated region
      $region9: #{tpu_custom_call.1} parent=5 // pred_check
        _
      $region10: #{tpu_custom_call.1} parent=5 // pred_check_branch
        %116 = sbr.rel (%p113) target = $region12
      $region11: #{tpu_custom_call.1} parent=5 // pred_region
        %s117 = ssub.s32 %s9, 1
        // Predicated region
        $region13: #{tpu_custom_call.1} parent=11 // pred_check
          %p118 = pneg %p56
        $region14: #{tpu_custom_call.1} parent=11 // pred_check_branch
          %120 = sbr.rel (%p118) target = $region16
        $region15: #{tpu_custom_call.1} parent=11 // pred_region
          _
        $region16: #{tpu_custom_call.1} parent=11 // pred_fallthru
          _
        // Predicated region
        $region17: #{tpu_custom_call.1} parent=11 // pred_check
          %p121 = pneg %p77
        $region18: #{tpu_custom_call.1} parent=11 // pred_check_branch
          %123 = sbr.rel (%p121) target = $region20
        $region19: #{tpu_custom_call.1} parent=11 // pred_region
          _
        $region20: #{tpu_custom_call.1} parent=11 // pred_fallthru
          _
      $region12: #{tpu_custom_call.1} parent=5 // pred_fallthru
        _
      %p124 = scmp.lt.s32.totalorder %s9, 4
      // Predicated region
      $region21: #{tpu_custom_call.1} parent=5 // pred_check
        %p125 = pneg %p124
      $region22: #{tpu_custom_call.1} parent=5 // pred_check_branch
        %127 = sbr.rel (%p125) target = $region24
      $region23: #{tpu_custom_call.1} parent=5 // pred_region
        // Predicated region
        $region25: #{tpu_custom_call.1} parent=23 // pred_check
          %p128 = pneg %p29
        $region26: #{tpu_custom_call.1} parent=23 // pred_check_branch
          %130 = sbr.rel (%p128) target = $region28
        $region27: #{tpu_custom_call.1} parent=23 // pred_region
          %s131 = smul.u32 7, %s9
          %s132 = ssub.s32 25, %s131
          %p133 = scmp.lt.s32.totalorder %s132, 7
          %s134 = scalar_select %p133, %s132, 7
          %s135 = smul.u32 8, %s134
          %p136 = scmp.lt.s32.totalorder %s131, 24
          %s137 = scalar_select %p136, %s131, 24
          %s138 = smul.addr %s137, 8
          %s139 = scalar_lea.vmem %s0, %s138
          %s140 = smul.u32 7, %s9
          %s141 = ssub.s32 25, %s140
          %p142 = scmp.lt.s32.totalorder %s141, 7
          %s143 = scalar_select %p142, %s141, 7
          %s144 = smul.u32 8, %s143
        $region28: #{tpu_custom_call.1} parent=23 // pred_fallthru
          _
      $region24: #{tpu_custom_call.1} parent=5 // pred_fallthru
        _
      %p145 = scmp.le.s32.totalorder 1, %s9
      %p146 = scmp.lt.s32.totalorder %s9, 5
      %p147 = pnand %p145, %p146
      %p148 = pneg %p147
      // Predicated region
      $region29: #{tpu_custom_call.1} parent=5 // pred_check
        _
      $region30: #{tpu_custom_call.1} parent=5 // pred_check_branch
        %150 = sbr.rel (%p147) target = $region32
      $region31: #{tpu_custom_call.1} parent=5 // pred_region
        %s151 = ssub.s32 %s9, 1
        %s152 = smul.u32 7, %s14
        %s153 = ssub.s32 25, %s152
        %p154 = scmp.lt.s32.totalorder %s153, 7
        %s155 = scalar_select %p154, %s153, 7
        %s156 = smul.u32 8, %s155
        %p157 = scmp.lt.s32.totalorder %s152, 24
        %s158 = scalar_select %p157, %s152, 24
        %s159 = smul.addr %s158, 8
        %s160 = scalar_lea.vmem %s0, %s159
        %p161 = pneg %p35
        %p162 = pneg %p32
        %p163 = pneg %p56
        %p164 = pneg %p53
        %p165 = pneg %p77
        %p166 = pneg %p74
        %p167 = pneg %p103
        %p168 = pneg %p100
        %s169 = sand.u32 %s90, 1
        %s170 = sand.u32 %s90, 1
        %s171 = smul.addr %s170, 56
        %s172 = scalar_lea.vmem [#allocation2], %s171
        %s173 = smul.u32 7, %s14
        %s174 = ssub.s32 25, %s173
        %p175 = scmp.lt.s32.totalorder %s174, 7
        %s176 = scalar_select %p175, %s174, 7
        %s177 = smul.u32 8, %s176
        %p178 = scmp.lt.s32.totalorder %s173, 24
        %s179 = scalar_select %p178, %s173, 24
        %s180 = smul.addr %s179, 8
        %s181 = scalar_lea.vmem %s0, %s180
        %s182 = smul.u32 7, %s14
        %s183 = ssub.s32 25, %s182
        %p184 = scmp.lt.s32.totalorder %s183, 7
        %s185 = scalar_select %p184, %s183, 7
        %s186 = smul.u32 8, %s185
        %s187 = smul.u32 7, %s14
        %s188 = ssub.s32 25, %s187
        %p189 = scmp.lt.s32.totalorder %s188, 7
        %s190 = scalar_select %p189, %s188, 7
        %s191 = smul.u32 8, %s190
        %v192 = vld [vmem:[%s181] sm:$0xff]
        %v193 = vld [vmem:[%s181 + $0x8] sm:$0xff]
        %v194 = vld [vmem:[%s181 + $0x10] sm:$0xff]
        %v195 = vld [vmem:[%s181 + $0x18] sm:$0xff]
        %v196 = vld [vmem:[%s181 + $0x20] sm:$0xff]
        %v197 = vld [vmem:[%s181 + $0x28] sm:$0xff]
        %v198 = vld [vmem:[%s181 + $0x30] sm:$0xff]
        %v199 = vld [vmem:[%s1] sm:$0x7]
        %v200 = vld [vmem:[%s2] sm:$0x1]
        %v202 = vperm.slane %v200, 0
        %vm204 = vcmask 23552
        %v206 = vsel %vm204, %v192, 0
        %v209 = vsel %vm204, %v193, 0
        %v212 = vsel %vm204, %v194, 0
        %v215 = vsel %vm204, %v195, 0
        %v218 = vsel %vm204, %v196, 0
        %v221 = vsel %vm204, %v197, 0
        %v224 = vsel %vm204, %v198, 0
        %vm226 = vcmask 1042432
        %v228 = vsel %vm226, %v199, 0
        %230 = vmatpush.msra.mxu0 0.0
        %231 = vmatpush.msra.mxu0 0.0
        %232 = vmatpush.msra.mxu0 0.0
        %233 = vmatpush.msra.mxu0 0.0
        %234 = vmatpush.msra.mxu0 0.0
        %235 = vmatpush.msra.mxu0 0.0
        %236 = vmatpush.msra.mxu0 0.0
        %237 = vmatpush.msra.mxu0 0.0
        %238 = vmatpush.msra.mxu0 0.0
        %239 = vmatpush.msra.mxu0 0.0
        %240 = vmatpush.msra.mxu0 0.0
        %241 = vmatpush.msra.mxu0 0.0
        %242 = vmatpush.msra.mxu0 0.0
        %243 = vmatpush.msra.mxu0 0.0
        %244 = vmatpush.msra.mxu0 0.0
        %v245 = vand.u32 %v228, 4294901760
        %246 = vmatpush.msra.mxu0 %v245
        %v247 = vand.u32 %v206, 4294901760
        %v248 = vsub.f32 %v206, %v247
        %v249 = vand.u32 %v248, 4294901760
        %v250 = vsub.f32 %v248, %v249
        %v251 = vand.u32 %v250, 4294901760
        %252 = vmatmul.f32.gmra.mxu0 %v251
        %v253 = vpop.f32.mrf.mxu0
        %v254 = vadd.f32 %v202, %v253
        %v255 = vand.u32 %v209, 4294901760
        %v256 = vsub.f32 %v209, %v255
        %v257 = vand.u32 %v256, 4294901760
        %v258 = vsub.f32 %v256, %v257
        %v259 = vand.u32 %v258, 4294901760
        %260 = vmatmul.f32.gmra.mxu0 %v259
        %v261 = vpop.f32.mrf.mxu0
        %v262 = vadd.f32 %v202, %v261
        %v263 = vand.u32 %v212, 4294901760
        %v264 = vsub.f32 %v212, %v263
        %v265 = vand.u32 %v264, 4294901760
        %v266 = vsub.f32 %v264, %v265
        %v267 = vand.u32 %v266, 4294901760
        %268 = vmatmul.f32.gmra.mxu0 %v267
        %v269 = vpop.f32.mrf.mxu0
        %v270 = vadd.f32 %v202, %v269
        %v271 = vand.u32 %v215, 4294901760
        %v272 = vsub.f32 %v215, %v271
        %v273 = vand.u32 %v272, 4294901760
        %v274 = vsub.f32 %v272, %v273
        %v275 = vand.u32 %v274, 4294901760
        %276 = vmatmul.f32.gmra.mxu0 %v275
        %v277 = vpop.f32.mrf.mxu0
        %v278 = vadd.f32 %v202, %v277
        %v279 = vand.u32 %v218, 4294901760
        %v280 = vsub.f32 %v218, %v279
        %v281 = vand.u32 %v280, 4294901760
        %v282 = vsub.f32 %v280, %v281
        %v283 = vand.u32 %v282, 4294901760
        %284 = vmatmul.f32.gmra.mxu0 %v283
        %v285 = vpop.f32.mrf.mxu0
        %v286 = vadd.f32 %v202, %v285
        %v287 = vand.u32 %v221, 4294901760
        %v288 = vsub.f32 %v221, %v287
        %v289 = vand.u32 %v288, 4294901760
        %v290 = vsub.f32 %v288, %v289
        %v291 = vand.u32 %v290, 4294901760
        %292 = vmatmul.f32.gmra.mxu0 %v291
        %v293 = vpop.f32.mrf.mxu0
        %v294 = vadd.f32 %v202, %v293
        %v295 = vand.u32 %v224, 4294901760
        %v296 = vsub.f32 %v224, %v295
        %v297 = vand.u32 %v296, 4294901760
        %v298 = vsub.f32 %v296, %v297
        %v299 = vand.u32 %v298, 4294901760
        %300 = vmatmul.f32.gmra.mxu0 %v299
        %v301 = vpop.f32.mrf.mxu0
        %v302 = vadd.f32 %v202, %v301
        %303 = vdwg.mxu0
        %304 = vmatpush.msra.mxu0 0.0
        %305 = vmatpush.msra.mxu0 0.0
        %306 = vmatpush.msra.mxu0 0.0
        %307 = vmatpush.msra.mxu0 0.0
        %308 = vmatpush.msra.mxu0 0.0
        %309 = vmatpush.msra.mxu0 0.0
        %310 = vmatpush.msra.mxu0 0.0
        %311 = vmatpush.msra.mxu0 0.0
        %312 = vmatpush.msra.mxu0 0.0
        %313 = vmatpush.msra.mxu0 0.0
        %314 = vmatpush.msra.mxu0 0.0
        %315 = vmatpush.msra.mxu0 0.0
        %316 = vmatpush.msra.mxu0 0.0
        %317 = vmatpush.msra.mxu0 0.0
        %318 = vmatpush.msra.mxu0 0.0
        %v319 = vand.u32 %v228, 4294901760
        %v320 = vsub.f32 %v228, %v319
        %v321 = vand.u32 %v320, 4294901760
        %v322 = vsub.f32 %v320, %v321
        %v323 = vand.u32 %v322, 4294901760
        %324 = vmatpush.msra.mxu0 %v323
        %v325 = vand.u32 %v206, 4294901760
        %326 = vmatmul.f32.gmra.mxu0 %v325
        %v327 = vpop.f32.mrf.mxu0
        %v328 = vadd.f32 %v254, %v327
        %v329 = vand.u32 %v209, 4294901760
        %330 = vmatmul.f32.gmra.mxu0 %v329
        %v331 = vpop.f32.mrf.mxu0
        %v332 = vadd.f32 %v262, %v331
        %v333 = vand.u32 %v212, 4294901760
        %334 = vmatmul.f32.gmra.mxu0 %v333
        %v335 = vpop.f32.mrf.mxu0
        %v336 = vadd.f32 %v270, %v335
        %v337 = vand.u32 %v215, 4294901760
        %338 = vmatmul.f32.gmra.mxu0 %v337
        %v339 = vpop.f32.mrf.mxu0
        %v340 = vadd.f32 %v278, %v339
        %v341 = vand.u32 %v218, 4294901760
        %342 = vmatmul.f32.gmra.mxu0 %v341
        %v343 = vpop.f32.mrf.mxu0
        %v344 = vadd.f32 %v286, %v343
        %v345 = vand.u32 %v221, 4294901760
        %346 = vmatmul.f32.gmra.mxu0 %v345
        %v347 = vpop.f32.mrf.mxu0
        %v348 = vadd.f32 %v294, %v347
        %v349 = vand.u32 %v224, 4294901760
        %350 = vmatmul.f32.gmra.mxu0 %v349
        %v351 = vpop.f32.mrf.mxu0
        %v352 = vadd.f32 %v302, %v351
        %353 = vdwg.mxu0
        %354 = vmatpush.msra.mxu0 0.0
        %355 = vmatpush.msra.mxu0 0.0
        %356 = vmatpush.msra.mxu0 0.0
        %357 = vmatpush.msra.mxu0 0.0
        %358 = vmatpush.msra.mxu0 0.0
        %359 = vmatpush.msra.mxu0 0.0
        %360 = vmatpush.msra.mxu0 0.0
        %361 = vmatpush.msra.mxu0 0.0
        %362 = vmatpush.msra.mxu0 0.0
        %363 = vmatpush.msra.mxu0 0.0
        %364 = vmatpush.msra.mxu0 0.0
        %365 = vmatpush.msra.mxu0 0.0
        %366 = vmatpush.msra.mxu0 0.0
        %367 = vmatpush.msra.mxu0 0.0
        %368 = vmatpush.msra.mxu0 0.0
        %v369 = vand.u32 %v228, 4294901760
        %v370 = vsub.f32 %v228, %v369
        %371 = vmatpush.msra.mxu0 %v370
        %v372 = vand.u32 %v206, 4294901760
        %v373 = vsub.f32 %v206, %v372
        %374 = vmatmul.f32.gmra.mxu0 %v373
        %v375 = vpop.f32.mrf.mxu0
        %v376 = vadd.f32 %v328, %v375
        %v377 = vand.u32 %v209, 4294901760
        %v378 = vsub.f32 %v209, %v377
        %379 = vmatmul.f32.gmra.mxu0 %v378
        %v380 = vpop.f32.mrf.mxu0
        %v381 = vadd.f32 %v332, %v380
        %v382 = vand.u32 %v212, 4294901760
        %v383 = vsub.f32 %v212, %v382
        %384 = vmatmul.f32.gmra.mxu0 %v383
        %v385 = vpop.f32.mrf.mxu0
        %v386 = vadd.f32 %v336, %v385
        %v387 = vand.u32 %v215, 4294901760
        %v388 = vsub.f32 %v215, %v387
        %389 = vmatmul.f32.gmra.mxu0 %v388
        %v390 = vpop.f32.mrf.mxu0
        %v391 = vadd.f32 %v340, %v390
        %v392 = vand.u32 %v218, 4294901760
        %v393 = vsub.f32 %v218, %v392
        %394 = vmatmul.f32.gmra.mxu0 %v393
        %v395 = vpop.f32.mrf.mxu0
        %v396 = vadd.f32 %v344, %v395
        %v397 = vand.u32 %v221, 4294901760
        %v398 = vsub.f32 %v221, %v397
        %399 = vmatmul.f32.gmra.mxu0 %v398
        %v400 = vpop.f32.mrf.mxu0
        %v401 = vadd.f32 %v348, %v400
        %v402 = vand.u32 %v224, 4294901760
        %v403 = vsub.f32 %v224, %v402
        %404 = vmatmul.f32.gmra.mxu0 %v403
        %v405 = vpop.f32.mrf.mxu0
        %v406 = vadd.f32 %v352, %v405
        %407 = vdwg.mxu0
        %408 = vmatpush.msra.mxu0 0.0
        %409 = vmatpush.msra.mxu0 0.0
        %410 = vmatpush.msra.mxu0 0.0
        %411 = vmatpush.msra.mxu0 0.0
        %412 = vmatpush.msra.mxu0 0.0
        %413 = vmatpush.msra.mxu0 0.0
        %414 = vmatpush.msra.mxu0 0.0
        %415 = vmatpush.msra.mxu0 0.0
        %416 = vmatpush.msra.mxu0 0.0
        %417 = vmatpush.msra.mxu0 0.0
        %418 = vmatpush.msra.mxu0 0.0
        %419 = vmatpush.msra.mxu0 0.0
        %420 = vmatpush.msra.mxu0 0.0
        %421 = vmatpush.msra.mxu0 0.0
        %422 = vmatpush.msra.mxu0 0.0
        %v423 = vand.u32 %v228, 4294901760
        %424 = vmatpush.msra.mxu0 %v423
        %v425 = vand.u32 %v206, 4294901760
        %v426 = vsub.f32 %v206, %v425
        %v427 = vand.u32 %v426, 4294901760
        %428 = vmatmul.f32.gmra.mxu0 %v427
        %v429 = vpop.f32.mrf.mxu0
        %v430 = vadd.f32 %v376, %v429
        %v431 = vand.u32 %v209, 4294901760
        %v432 = vsub.f32 %v209, %v431
        %v433 = vand.u32 %v432, 4294901760
        %434 = vmatmul.f32.gmra.mxu0 %v433
        %v435 = vpop.f32.mrf.mxu0
        %v436 = vadd.f32 %v381, %v435
        %v437 = vand.u32 %v212, 4294901760
        %v438 = vsub.f32 %v212, %v437
        %v439 = vand.u32 %v438, 4294901760
        %440 = vmatmul.f32.gmra.mxu0 %v439
        %v441 = vpop.f32.mrf.mxu0
        %v442 = vadd.f32 %v386, %v441
        %v443 = vand.u32 %v215, 4294901760
        %v444 = vsub.f32 %v215, %v443
        %v445 = vand.u32 %v444, 4294901760
        %446 = vmatmul.f32.gmra.mxu0 %v445
        %v447 = vpop.f32.mrf.mxu0
        %v448 = vadd.f32 %v391, %v447
        %v449 = vand.u32 %v218, 4294901760
        %v450 = vsub.f32 %v218, %v449
        %v451 = vand.u32 %v450, 4294901760
        %452 = vmatmul.f32.gmra.mxu0 %v451
        %v453 = vpop.f32.mrf.mxu0
        %v454 = vadd.f32 %v396, %v453
        %v455 = vand.u32 %v221, 4294901760
        %v456 = vsub.f32 %v221, %v455
        %v457 = vand.u32 %v456, 4294901760
        %458 = vmatmul.f32.gmra.mxu0 %v457
        %v459 = vpop.f32.mrf.mxu0
        %v460 = vadd.f32 %v401, %v459
        %v461 = vand.u32 %v224, 4294901760
        %v462 = vsub.f32 %v224, %v461
        %v463 = vand.u32 %v462, 4294901760
        %464 = vmatmul.f32.gmra.mxu0 %v463
        %v465 = vpop.f32.mrf.mxu0
        %v466 = vadd.f32 %v406, %v465
        %467 = vdwg.mxu0
        %468 = vmatpush.msra.mxu0 0.0
        %469 = vmatpush.msra.mxu0 0.0
        %470 = vmatpush.msra.mxu0 0.0
        %471 = vmatpush.msra.mxu0 0.0
        %472 = vmatpush.msra.mxu0 0.0
        %473 = vmatpush.msra.mxu0 0.0
        %474 = vmatpush.msra.mxu0 0.0
        %475 = vmatpush.msra.mxu0 0.0
        %476 = vmatpush.msra.mxu0 0.0
        %477 = vmatpush.msra.mxu0 0.0
        %478 = vmatpush.msra.mxu0 0.0
        %479 = vmatpush.msra.mxu0 0.0
        %480 = vmatpush.msra.mxu0 0.0
        %481 = vmatpush.msra.mxu0 0.0
        %482 = vmatpush.msra.mxu0 0.0
        %v483 = vand.u32 %v228, 4294901760
        %v484 = vsub.f32 %v228, %v483
        %v485 = vand.u32 %v484, 4294901760
        %486 = vmatpush.msra.mxu0 %v485
        %v487 = vand.u32 %v206, 4294901760
        %488 = vmatmul.f32.gmra.mxu0 %v487
        %v489 = vpop.f32.mrf.mxu0
        %v490 = vadd.f32 %v430, %v489
        %v491 = vand.u32 %v209, 4294901760
        %492 = vmatmul.f32.gmra.mxu0 %v491
        %v493 = vpop.f32.mrf.mxu0
        %v494 = vadd.f32 %v436, %v493
        %v495 = vand.u32 %v212, 4294901760
        %496 = vmatmul.f32.gmra.mxu0 %v495
        %v497 = vpop.f32.mrf.mxu0
        %v498 = vadd.f32 %v442, %v497
        %v499 = vand.u32 %v215, 4294901760
        %500 = vmatmul.f32.gmra.mxu0 %v499
        %v501 = vpop.f32.mrf.mxu0
        %v502 = vadd.f32 %v448, %v501
        %v503 = vand.u32 %v218, 4294901760
        %504 = vmatmul.f32.gmra.mxu0 %v503
        %v505 = vpop.f32.mrf.mxu0
        %v506 = vadd.f32 %v454, %v505
        %v507 = vand.u32 %v221, 4294901760
        %508 = vmatmul.f32.gmra.mxu0 %v507
        %v509 = vpop.f32.mrf.mxu0
        %v510 = vadd.f32 %v460, %v509
        %v511 = vand.u32 %v224, 4294901760
        %512 = vmatmul.f32.gmra.mxu0 %v511
        %v513 = vpop.f32.mrf.mxu0
        %v514 = vadd.f32 %v466, %v513
        %515 = vdwg.mxu0
        %516 = vmatpush.msra.mxu0 0.0
        %517 = vmatpush.msra.mxu0 0.0
        %518 = vmatpush.msra.mxu0 0.0
        %519 = vmatpush.msra.mxu0 0.0
        %520 = vmatpush.msra.mxu0 0.0
        %521 = vmatpush.msra.mxu0 0.0
        %522 = vmatpush.msra.mxu0 0.0
        %523 = vmatpush.msra.mxu0 0.0
        %524 = vmatpush.msra.mxu0 0.0
        %525 = vmatpush.msra.mxu0 0.0
        %526 = vmatpush.msra.mxu0 0.0
        %527 = vmatpush.msra.mxu0 0.0
        %528 = vmatpush.msra.mxu0 0.0
        %529 = vmatpush.msra.mxu0 0.0
        %530 = vmatpush.msra.mxu0 0.0
        %v531 = vand.u32 %v228, 4294901760
        %532 = vmatpush.msra.mxu0 %v531
        %v533 = vand.u32 %v206, 4294901760
        %534 = vmatmul.f32.gmra.mxu0 %v533
        %v535 = vpop.f32.mrf.mxu0
        %v536 = vadd.f32 %v490, %v535
        %v537 = vand.u32 %v209, 4294901760
        %538 = vmatmul.f32.gmra.mxu0 %v537
        %v539 = vpop.f32.mrf.mxu0
        %v540 = vadd.f32 %v494, %v539
        %v541 = vand.u32 %v212, 4294901760
        %542 = vmatmul.f32.gmra.mxu0 %v541
        %v543 = vpop.f32.mrf.mxu0
        %v544 = vadd.f32 %v498, %v543
        %v545 = vand.u32 %v215, 4294901760
        %546 = vmatmul.f32.gmra.mxu0 %v545
        %v547 = vpop.f32.mrf.mxu0
        %v548 = vadd.f32 %v502, %v547
        %v549 = vand.u32 %v218, 4294901760
        %550 = vmatmul.f32.gmra.mxu0 %v549
        %v551 = vpop.f32.mrf.mxu0
        %v552 = vadd.f32 %v506, %v551
        %v553 = vand.u32 %v221, 4294901760
        %554 = vmatmul.f32.gmra.mxu0 %v553
        %v555 = vpop.f32.mrf.mxu0
        %v556 = vadd.f32 %v510, %v555
        %v557 = vand.u32 %v224, 4294901760
        %558 = vmatmul.f32.gmra.mxu0 %v557
        %v559 = vpop.f32.mrf.mxu0
        %v560 = vadd.f32 %v514, %v559
        %561 = vdwg.mxu0
        %v562 = vmul.f32 %v536, 30.0
        %v563 = vmul.f32 %v540, 30.0
        %v564 = vmul.f32 %v544, 30.0
        %v565 = vmul.f32 %v548, 30.0
        %v566 = vmul.f32 %v552, 30.0
        %v567 = vmul.f32 %v556, 30.0
        %v568 = vmul.f32 %v560, 30.0
        %v569 = vand.u32 2147483647, %v562
        %vm570 = vcmp.le.f32.partialorder %v569, 0.7853982
        %vm571 = vcmp.lt.s32.totalorder %v562, 0
        %v572 = vand.u32 %v562, 2139095040
        %v573 = vshrl.u32 %v572, 23
        %v574 = vsub.s32 %v573, 127
        %v575 = vand.u32 2147483647, %v562
        %v576 = vand.u32 %v575, 8388607
        %v577 = vor.u32 %v576, 8388608
        %v578 = vsub.s32 0, %v577
        %v579 = vadd.s32 %v574, 1
        %vm580 = vcmp.gt.s32.totalorder %v579, 0
        %v581 = vsel %vm580, %v579, 0
        %v582 = vshrl.u32 %v581, 5
        %v583 = vand.u32 %v581, 31
        %v584 = vsub.s32 32, %v583
        %v585 = vshrl.u32 683565275, %v584
        %v586 = vshll.u32 683565275, %v583
        %v587 = vshrl.u32 2475754826, %v584
        %v588 = vor.u32 %v586, %v587
        %v589 = vshll.u32 2475754826, %v583
        %v590 = vshrl.u32 2131351028, %v584
        %v591 = vor.u32 %v589, %v590
        %v592 = vshll.u32 2131351028, %v583
        %v593 = vshrl.u32 2102212464, %v584
        %v594 = vor.u32 %v592, %v593
        %v595 = vshll.u32 2102212464, %v583
        %v596 = vshrl.u32 920167782, %v584
        %v597 = vor.u32 %v595, %v596
        %v598 = vshll.u32 920167782, %v583
        %v599 = vshrl.u32 1326507024, %v584
        %v600 = vor.u32 %v598, %v599
        %vm601 = vcmp.lt.s32.totalorder %v582, 1
        %vm602 = vcmp.lt.s32.totalorder %v582, 2
        %vm603 = vcmp.lt.s32.totalorder %v582, 3
        %vm604 = vcmp.lt.s32.totalorder %v582, 4
        %v605 = vsel %vm601, %v585, %v588
        %v606 = vsel %vm604, %v594, 2102212464
        %v607 = vsel %vm603, %v591, %v606
        %v608 = vsel %vm602, %v605, %v607
        %v609 = vsel %vm601, %v588, %v591
        %v610 = vsel %vm604, %v597, 920167782
        %v611 = vsel %vm603, %v594, %v610
        %v612 = vsel %vm602, %v609, %v611
        %v613 = vsel %vm601, %v591, %v594
        %v614 = vsel %vm604, %v600, 1326507024
        %v615 = vsel %vm603, %v597, %v614
        %v616 = vsel %vm602, %v613, %v615
        %v617 = vshll.u32 %v577, 8
        %v618 = vand.u32 %v617, 65535
        %v619 = vshrl.u32 %v617, 16
        %v620 = vand.u32 %v616, 65535
        %v621 = vshrl.u32 %v616, 16
        %v622 = vmul.u32 %v618, %v620
        %v623 = vmul.u32 %v618, %v621
        %v624 = vmul.u32 %v619, %v620
        %v625 = vmul.u32 %v619, %v621
        %v626 = vshll.u32 %v623, 16
        %v627 = vshrl.u32 %v623, 16
        %v628 = vshll.u32 %v624, 16
        %v629 = vshrl.u32 %v624, 16
        %vm630 = vc.u32 %v622, %v626
        %v631 = vsel %vm630, 1, 0
        %v632 = vadd.s32 %v622, %v626
        %v633 = vadd.s32 %v625, %v631
        %vm634 = vc.u32 %v632, %v628
        %v635 = vsel %vm634, 1, 0
        %v636 = vadd.s32 %v632, %v628
        %v637 = vadd.s32 %v633, %v635
        %v638 = vadd.s32 %v637, %v627
        %v639 = vadd.s32 %v638, %v629
        %v640 = vand.u32 %v617, 65535
        %v641 = vshrl.u32 %v617, 16
        %v642 = vand.u32 %v612, 65535
        %v643 = vshrl.u32 %v612, 16
        %v644 = vmul.u32 %v640, %v642
        %v645 = vmul.u32 %v640, %v643
        %v646 = vmul.u32 %v641, %v642
        %v647 = vmul.u32 %v641, %v643
        %v648 = vshll.u32 %v645, 16
        %v649 = vshrl.u32 %v645, 16
        %v650 = vshll.u32 %v646, 16
        %v651 = vshrl.u32 %v646, 16
        %vm652 = vc.u32 %v644, %v648
        %v653 = vsel %vm652, 1, 0
        %v654 = vadd.s32 %v644, %v648
        %v655 = vadd.s32 %v647, %v653
        %vm656 = vc.u32 %v654, %v650
        %v657 = vsel %vm656, 1, 0
        %v658 = vadd.s32 %v654, %v650
        %v659 = vadd.s32 %v655, %v657
        %v660 = vadd.s32 %v659, %v649
        %v661 = vadd.s32 %v660, %v651
        %v662 = vmul.u32 %v617, %v608
        %v663 = vadd.s32 %v639, %v658
        %vm664 = vc.u32 %v639, %v658
        %v665 = vadd.s32 %v661, 1
        %v666 = vsel %vm664, %v665, %v661
        %v667 = vadd.s32 %v662, %v666
        %v668 = vadd.s32 %v667, 536870912
        %v669 = vshrl.u32 %v668, 30
        %v670 = vshll.u32 %v669, 30
        %v671 = vsub.s32 %v667, %v670
        %vm672 = vcmp.lt.s32.totalorder %v671, 0
        %v673 = vsub.s32 0, %v671
        %v674 = vsel %vm672, %v673, %v671
        %v675 = vclz %v674
        %v676 = vsub.s32 %v675, 2
        %vm677 = vcmp.gt.s32.totalorder 0, %v676
        %v678 = vsel %vm677, 0, %v676
        %v679 = vsub.s32 32, %v678
        %v680 = vshll.u32 %v671, %v678
        %v681 = vshrl.u32 %v663, %v679
        %v682 = vor.u32 %v680, %v681
        %v683 = vsub.s32 4294967266, %v678
        %v684 = vadd.s32 %v683, 127
        %v685 = vshll.u32 %v684, 23
        %v686 = vor.u32 4788187, %v685
        %v687 = vand.u32 2147483647, %v686
        %v689 = vcvt.s32.f32 %v682
        %v690 = vmul.f32 %v689, %v687
        %v691 = vxor.u32 %v690, 2147483648
        %v692 = vsel %vm571, %v691, %v690
        %v693 = vsub.s32 4, %v669
        %v694 = vsel %vm571, %v693, %v669
        %v695 = vsel %vm570, %v562, %v692
        %v696 = vsel %vm570, 0, %v694
        %v697 = vmul.f32 %v695, %v695
        %v698 = vmul.f32 %v697, -0.001358992
        %v699 = vadd.f32 %v698, 0.041655596
        %v700 = vmul.f32 %v697, %v699
        %v701 = vadd.f32 %v700, -0.4999988
        %v702 = vmul.f32 %v697, %v701
        %v703 = vadd.f32 1.0, %v702
        %v704 = vmul.f32 %v695, %v695
        %v705 = vmul.f32 %v704, -0.00019511016
        %v706 = vadd.f32 %v705, 0.008332121
        %v707 = vmul.f32 %v704, %v706
        %v708 = vadd.f32 %v707, -0.16666654
        %v709 = vmul.f32 %v704, %v708
        %v710 = vadd.f32 %v709, 1.0
        %v711 = vmul.f32 %v710, %v695
        %vm712 = vweird.f32 %v562
        %v713 = vadd.s32 %v696, 3
        %v714 = vand.u32 %v713, 3
        %vm715 = vcmp.lt.s32.totalorder %v714, 2
        %vm716 = vcmp.eq.s32.totalorder %v714, 0
        %v717 = vxor.u32 %v711, 2147483648
        %v718 = vsel %vm716, %v703, %v717
        %vm719 = vcmp.eq.s32.totalorder %v714, 2
        %v720 = vxor.u32 %v703, 2147483648
        %v721 = vsel %vm719, %v720, %v711
        %v722 = vsel %vm715, %v718, %v721
        %v723 = vsel %vm712, nan, %v722
        %v724 = vand.u32 2147483647, %v563
        %vm725 = vcmp.le.f32.partialorder %v724, 0.7853982
        %vm726 = vcmp.lt.s32.totalorder %v563, 0
        %v727 = vand.u32 %v563, 2139095040
        %v728 = vshrl.u32 %v727, 23
        %v729 = vsub.s32 %v728, 127
        %v730 = vand.u32 2147483647, %v563
        %v731 = vand.u32 %v730, 8388607
        %v732 = vor.u32 %v731, 8388608
        %v733 = vsub.s32 0, %v732
        %v734 = vadd.s32 %v729, 1
        %vm735 = vcmp.gt.s32.totalorder %v734, 0
        %v736 = vsel %vm735, %v734, 0
        %v737 = vshrl.u32 %v736, 5
        %v738 = vand.u32 %v736, 31
        %v739 = vsub.s32 32, %v738
        %v740 = vshrl.u32 683565275, %v739
        %v741 = vshll.u32 683565275, %v738
        %v742 = vshrl.u32 2475754826, %v739
        %v743 = vor.u32 %v741, %v742
        %v744 = vshll.u32 2475754826, %v738
        %v745 = vshrl.u32 2131351028, %v739
        %v746 = vor.u32 %v744, %v745
        %v747 = vshll.u32 2131351028, %v738
        %v748 = vshrl.u32 2102212464, %v739
        %v749 = vor.u32 %v747, %v748
        %v750 = vshll.u32 2102212464, %v738
        %v751 = vshrl.u32 920167782, %v739
        %v752 = vor.u32 %v750, %v751
        %v753 = vshll.u32 920167782, %v738
        %v754 = vshrl.u32 1326507024, %v739
        %v755 = vor.u32 %v753, %v754
        %vm756 = vcmp.lt.s32.totalorder %v737, 1
        %vm757 = vcmp.lt.s32.totalorder %v737, 2
        %vm758 = vcmp.lt.s32.totalorder %v737, 3
        %vm759 = vcmp.lt.s32.totalorder %v737, 4
        %v760 = vsel %vm756, %v740, %v743
        %v761 = vsel %vm759, %v749, 2102212464
        %v762 = vsel %vm758, %v746, %v761
        %v763 = vsel %vm757, %v760, %v762
        %v764 = vsel %vm756, %v743, %v746
        %v765 = vsel %vm759, %v752, 920167782
        %v766 = vsel %vm758, %v749, %v765
        %v767 = vsel %vm757, %v764, %v766
        %v768 = vsel %vm756, %v746, %v749
        %v769 = vsel %vm759, %v755, 1326507024
        %v770 = vsel %vm758, %v752, %v769
        %v771 = vsel %vm757, %v768, %v770
        %v772 = vshll.u32 %v732, 8
        %v773 = vand.u32 %v772, 65535
        %v774 = vshrl.u32 %v772, 16
        %v775 = vand.u32 %v771, 65535
        %v776 = vshrl.u32 %v771, 16
        %v777 = vmul.u32 %v773, %v775
        %v778 = vmul.u32 %v773, %v776
        %v779 = vmul.u32 %v774, %v775
        %v780 = vmul.u32 %v774, %v776
        %v781 = vshll.u32 %v778, 16
        %v782 = vshrl.u32 %v778, 16
        %v783 = vshll.u32 %v779, 16
        %v784 = vshrl.u32 %v779, 16
        %vm785 = vc.u32 %v777, %v781
        %v786 = vsel %vm785, 1, 0
        %v787 = vadd.s32 %v777, %v781
        %v788 = vadd.s32 %v780, %v786
        %vm789 = vc.u32 %v787, %v783
        %v790 = vsel %vm789, 1, 0
        %v791 = vadd.s32 %v787, %v783
        %v792 = vadd.s32 %v788, %v790
        %v793 = vadd.s32 %v792, %v782
        %v794 = vadd.s32 %v793, %v784
        %v795 = vand.u32 %v772, 65535
        %v796 = vshrl.u32 %v772, 16
        %v797 = vand.u32 %v767, 65535
        %v798 = vshrl.u32 %v767, 16
        %v799 = vmul.u32 %v795, %v797
        %v800 = vmul.u32 %v795, %v798
        %v801 = vmul.u32 %v796, %v797
        %v802 = vmul.u32 %v796, %v798
        %v803 = vshll.u32 %v800, 16
        %v804 = vshrl.u32 %v800, 16
        %v805 = vshll.u32 %v801, 16
        %v806 = vshrl.u32 %v801, 16
        %vm807 = vc.u32 %v799, %v803
        %v808 = vsel %vm807, 1, 0
        %v809 = vadd.s32 %v799, %v803
        %v810 = vadd.s32 %v802, %v808
        %vm811 = vc.u32 %v809, %v805
        %v812 = vsel %vm811, 1, 0
        %v813 = vadd.s32 %v809, %v805
        %v814 = vadd.s32 %v810, %v812
        %v815 = vadd.s32 %v814, %v804
        %v816 = vadd.s32 %v815, %v806
        %v817 = vmul.u32 %v772, %v763
        %v818 = vadd.s32 %v794, %v813
        %vm819 = vc.u32 %v794, %v813
        %v820 = vadd.s32 %v816, 1
        %v821 = vsel %vm819, %v820, %v816
        %v822 = vadd.s32 %v817, %v821
        %v823 = vadd.s32 %v822, 536870912
        %v824 = vshrl.u32 %v823, 30
        %v825 = vshll.u32 %v824, 30
        %v826 = vsub.s32 %v822, %v825
        %vm827 = vcmp.lt.s32.totalorder %v826, 0
        %v828 = vsub.s32 0, %v826
        %v829 = vsel %vm827, %v828, %v826
        %v830 = vclz %v829
        %v831 = vsub.s32 %v830, 2
        %vm832 = vcmp.gt.s32.totalorder 0, %v831
        %v833 = vsel %vm832, 0, %v831
        %v834 = vsub.s32 32, %v833
        %v835 = vshll.u32 %v826, %v833
        %v836 = vshrl.u32 %v818, %v834
        %v837 = vor.u32 %v835, %v836
        %v838 = vsub.s32 4294967266, %v833
        %v839 = vadd.s32 %v838, 127
        %v840 = vshll.u32 %v839, 23
        %v841 = vor.u32 4788187, %v840
        %v842 = vand.u32 2147483647, %v841
        %v844 = vcvt.s32.f32 %v837
        %v845 = vmul.f32 %v844, %v842
        %v846 = vxor.u32 %v845, 2147483648
        %v847 = vsel %vm726, %v846, %v845
        %v848 = vsub.s32 4, %v824
        %v849 = vsel %vm726, %v848, %v824
        %v850 = vsel %vm725, %v563, %v847
        %v851 = vsel %vm725, 0, %v849
        %v852 = vmul.f32 %v850, %v850
        %v853 = vmul.f32 %v852, -0.001358992
        %v854 = vadd.f32 %v853, 0.041655596
        %v855 = vmul.f32 %v852, %v854
        %v856 = vadd.f32 %v855, -0.4999988
        %v857 = vmul.f32 %v852, %v856
        %v858 = vadd.f32 1.0, %v857
        %v859 = vmul.f32 %v850, %v850
        %v860 = vmul.f32 %v859, -0.00019511016
        %v861 = vadd.f32 %v860, 0.008332121
        %v862 = vmul.f32 %v859, %v861
        %v863 = vadd.f32 %v862, -0.16666654
        %v864 = vmul.f32 %v859, %v863
        %v865 = vadd.f32 %v864, 1.0
        %v866 = vmul.f32 %v865, %v850
        %vm867 = vweird.f32 %v563
        %v868 = vadd.s32 %v851, 3
        %v869 = vand.u32 %v868, 3
        %vm870 = vcmp.lt.s32.totalorder %v869, 2
        %vm871 = vcmp.eq.s32.totalorder %v869, 0
        %v872 = vxor.u32 %v866, 2147483648
        %v873 = vsel %vm871, %v858, %v872
        %vm874 = vcmp.eq.s32.totalorder %v869, 2
        %v875 = vxor.u32 %v858, 2147483648
        %v876 = vsel %vm874, %v875, %v866
        %v877 = vsel %vm870, %v873, %v876
        %v878 = vsel %vm867, nan, %v877
        %v879 = vand.u32 2147483647, %v564
        %vm880 = vcmp.le.f32.partialorder %v879, 0.7853982
        %vm881 = vcmp.lt.s32.totalorder %v564, 0
        %v882 = vand.u32 %v564, 2139095040
        %v883 = vshrl.u32 %v882, 23
        %v884 = vsub.s32 %v883, 127
        %v885 = vand.u32 2147483647, %v564
        %v886 = vand.u32 %v885, 8388607
        %v887 = vor.u32 %v886, 8388608
        %v888 = vsub.s32 0, %v887
        %v889 = vadd.s32 %v884, 1
        %vm890 = vcmp.gt.s32.totalorder %v889, 0
        %v891 = vsel %vm890, %v889, 0
        %v892 = vshrl.u32 %v891, 5
        %v893 = vand.u32 %v891, 31
        %v894 = vsub.s32 32, %v893
        %v895 = vshrl.u32 683565275, %v894
        %v896 = vshll.u32 683565275, %v893
        %v897 = vshrl.u32 2475754826, %v894
        %v898 = vor.u32 %v896, %v897
        %v899 = vshll.u32 2475754826, %v893
        %v900 = vshrl.u32 2131351028, %v894
        %v901 = vor.u32 %v899, %v900
        %v902 = vshll.u32 2131351028, %v893
        %v903 = vshrl.u32 2102212464, %v894
        %v904 = vor.u32 %v902, %v903
        %v905 = vshll.u32 2102212464, %v893
        %v906 = vshrl.u32 920167782, %v894
        %v907 = vor.u32 %v905, %v906
        %v908 = vshll.u32 920167782, %v893
        %v909 = vshrl.u32 1326507024, %v894
        %v910 = vor.u32 %v908, %v909
        %vm911 = vcmp.lt.s32.totalorder %v892, 1
        %vm912 = vcmp.lt.s32.totalorder %v892, 2
        %vm913 = vcmp.lt.s32.totalorder %v892, 3
        %vm914 = vcmp.lt.s32.totalorder %v892, 4
        %v915 = vsel %vm911, %v895, %v898
        %v916 = vsel %vm914, %v904, 2102212464
        %v917 = vsel %vm913, %v901, %v916
        %v918 = vsel %vm912, %v915, %v917
        %v919 = vsel %vm911, %v898, %v901
        %v920 = vsel %vm914, %v907, 920167782
        %v921 = vsel %vm913, %v904, %v920
        %v922 = vsel %vm912, %v919, %v921
        %v923 = vsel %vm911, %v901, %v904
        %v924 = vsel %vm914, %v910, 1326507024
        %v925 = vsel %vm913, %v907, %v924
        %v926 = vsel %vm912, %v923, %v925
        %v927 = vshll.u32 %v887, 8
        %v928 = vand.u32 %v927, 65535
        %v929 = vshrl.u32 %v927, 16
        %v930 = vand.u32 %v926, 65535
        %v931 = vshrl.u32 %v926, 16
        %v932 = vmul.u32 %v928, %v930
        %v933 = vmul.u32 %v928, %v931
        %v934 = vmul.u32 %v929, %v930
        %v935 = vmul.u32 %v929, %v931
        %v936 = vshll.u32 %v933, 16
        %v937 = vshrl.u32 %v933, 16
        %v938 = vshll.u32 %v934, 16
        %v939 = vshrl.u32 %v934, 16
        %vm940 = vc.u32 %v932, %v936
        %v941 = vsel %vm940, 1, 0
        %v942 = vadd.s32 %v932, %v936
        %v943 = vadd.s32 %v935, %v941
        %vm944 = vc.u32 %v942, %v938
        %v945 = vsel %vm944, 1, 0
        %v946 = vadd.s32 %v942, %v938
        %v947 = vadd.s32 %v943, %v945
        %v948 = vadd.s32 %v947, %v937
        %v949 = vadd.s32 %v948, %v939
        %v950 = vand.u32 %v927, 65535
        %v951 = vshrl.u32 %v927, 16
        %v952 = vand.u32 %v922, 65535
        %v953 = vshrl.u32 %v922, 16
        %v954 = vmul.u32 %v950, %v952
        %v955 = vmul.u32 %v950, %v953
        %v956 = vmul.u32 %v951, %v952
        %v957 = vmul.u32 %v951, %v953
        %v958 = vshll.u32 %v955, 16
        %v959 = vshrl.u32 %v955, 16
        %v960 = vshll.u32 %v956, 16
        %v961 = vshrl.u32 %v956, 16
        %vm962 = vc.u32 %v954, %v958
        %v963 = vsel %vm962, 1, 0
        %v964 = vadd.s32 %v954, %v958
        %v965 = vadd.s32 %v957, %v963
        %vm966 = vc.u32 %v964, %v960
        %v967 = vsel %vm966, 1, 0
        %v968 = vadd.s32 %v964, %v960
        %v969 = vadd.s32 %v965, %v967
        %v970 = vadd.s32 %v969, %v959
        %v971 = vadd.s32 %v970, %v961
        %v972 = vmul.u32 %v927, %v918
        %v973 = vadd.s32 %v949, %v968
        %vm974 = vc.u32 %v949, %v968
        %v975 = vadd.s32 %v971, 1
        %v976 = vsel %vm974, %v975, %v971
        %v977 = vadd.s32 %v972, %v976
        %v978 = vadd.s32 %v977, 536870912
        %v979 = vshrl.u32 %v978, 30
        %v980 = vshll.u32 %v979, 30
        %v981 = vsub.s32 %v977, %v980
        %vm982 = vcmp.lt.s32.totalorder %v981, 0
        %v983 = vsub.s32 0, %v981
        %v984 = vsel %vm982, %v983, %v981
        %v985 = vclz %v984
        %v986 = vsub.s32 %v985, 2
        %vm987 = vcmp.gt.s32.totalorder 0, %v986
        %v988 = vsel %vm987, 0, %v986
        %v989 = vsub.s32 32, %v988
        %v990 = vshll.u32 %v981, %v988
        %v991 = vshrl.u32 %v973, %v989
        %v992 = vor.u32 %v990, %v991
        %v993 = vsub.s32 4294967266, %v988
        %v994 = vadd.s32 %v993, 127
        %v995 = vshll.u32 %v994, 23
        %v996 = vor.u32 4788187, %v995
        %v997 = vand.u32 2147483647, %v996
        %v999 = vcvt.s32.f32 %v992
        %v1000 = vmul.f32 %v999, %v997
        %v1001 = vxor.u32 %v1000, 2147483648
        %v1002 = vsel %vm881, %v1001, %v1000
        %v1003 = vsub.s32 4, %v979
        %v1004 = vsel %vm881, %v1003, %v979
        %v1005 = vsel %vm880, %v564, %v1002
        %v1006 = vsel %vm880, 0, %v1004
        %v1007 = vmul.f32 %v1005, %v1005
        %v1008 = vmul.f32 %v1007, -0.001358992
        %v1009 = vadd.f32 %v1008, 0.041655596
        %v1010 = vmul.f32 %v1007, %v1009
        %v1011 = vadd.f32 %v1010, -0.4999988
        %v1012 = vmul.f32 %v1007, %v1011
        %v1013 = vadd.f32 1.0, %v1012
        %v1014 = vmul.f32 %v1005, %v1005
        %v1015 = vmul.f32 %v1014, -0.00019511016
        %v1016 = vadd.f32 %v1015, 0.008332121
        %v1017 = vmul.f32 %v1014, %v1016
        %v1018 = vadd.f32 %v1017, -0.16666654
        %v1019 = vmul.f32 %v1014, %v1018
        %v1020 = vadd.f32 %v1019, 1.0
        %v1021 = vmul.f32 %v1020, %v1005
        %vm1022 = vweird.f32 %v564
        %v1023 = vadd.s32 %v1006, 3
        %v1024 = vand.u32 %v1023, 3
        %vm1025 = vcmp.lt.s32.totalorder %v1024, 2
        %vm1026 = vcmp.eq.s32.totalorder %v1024, 0
        %v1027 = vxor.u32 %v1021, 2147483648
        %v1028 = vsel %vm1026, %v1013, %v1027
        %vm1029 = vcmp.eq.s32.totalorder %v1024, 2
        %v1030 = vxor.u32 %v1013, 2147483648
        %v1031 = vsel %vm1029, %v1030, %v1021
        %v1032 = vsel %vm1025, %v1028, %v1031
        %v1033 = vsel %vm1022, nan, %v1032
        %v1034 = vand.u32 2147483647, %v565
        %vm1035 = vcmp.le.f32.partialorder %v1034, 0.7853982
        %vm1036 = vcmp.lt.s32.totalorder %v565, 0
        %v1037 = vand.u32 %v565, 2139095040
        %v1038 = vshrl.u32 %v1037, 23
        %v1039 = vsub.s32 %v1038, 127
        %v1040 = vand.u32 2147483647, %v565
        %v1041 = vand.u32 %v1040, 8388607
        %v1042 = vor.u32 %v1041, 8388608
        %v1043 = vsub.s32 0, %v1042
        %v1044 = vadd.s32 %v1039, 1
        %vm1045 = vcmp.gt.s32.totalorder %v1044, 0
        %v1046 = vsel %vm1045, %v1044, 0
        %v1047 = vshrl.u32 %v1046, 5
        %v1048 = vand.u32 %v1046, 31
        %v1049 = vsub.s32 32, %v1048
        %v1050 = vshrl.u32 683565275, %v1049
        %v1051 = vshll.u32 683565275, %v1048
        %v1052 = vshrl.u32 2475754826, %v1049
        %v1053 = vor.u32 %v1051, %v1052
        %v1054 = vshll.u32 2475754826, %v1048
        %v1055 = vshrl.u32 2131351028, %v1049
        %v1056 = vor.u32 %v1054, %v1055
        %v1057 = vshll.u32 2131351028, %v1048
        %v1058 = vshrl.u32 2102212464, %v1049
        %v1059 = vor.u32 %v1057, %v1058
        %v1060 = vshll.u32 2102212464, %v1048
        %v1061 = vshrl.u32 920167782, %v1049
        %v1062 = vor.u32 %v1060, %v1061
        %v1063 = vshll.u32 920167782, %v1048
        %v1064 = vshrl.u32 1326507024, %v1049
        %v1065 = vor.u32 %v1063, %v1064
        %vm1066 = vcmp.lt.s32.totalorder %v1047, 1
        %vm1067 = vcmp.lt.s32.totalorder %v1047, 2
        %vm1068 = vcmp.lt.s32.totalorder %v1047, 3
        %vm1069 = vcmp.lt.s32.totalorder %v1047, 4
        %v1070 = vsel %vm1066, %v1050, %v1053
        %v1071 = vsel %vm1069, %v1059, 2102212464
        %v1072 = vsel %vm1068, %v1056, %v1071
        %v1073 = vsel %vm1067, %v1070, %v1072
        %v1074 = vsel %vm1066, %v1053, %v1056
        %v1075 = vsel %vm1069, %v1062, 920167782
        %v1076 = vsel %vm1068, %v1059, %v1075
        %v1077 = vsel %vm1067, %v1074, %v1076
        %v1078 = vsel %vm1066, %v1056, %v1059
        %v1079 = vsel %vm1069, %v1065, 1326507024
        %v1080 = vsel %vm1068, %v1062, %v1079
        %v1081 = vsel %vm1067, %v1078, %v1080
        %v1082 = vshll.u32 %v1042, 8
        %v1083 = vand.u32 %v1082, 65535
        %v1084 = vshrl.u32 %v1082, 16
        %v1085 = vand.u32 %v1081, 65535
        %v1086 = vshrl.u32 %v1081, 16
        %v1087 = vmul.u32 %v1083, %v1085
        %v1088 = vmul.u32 %v1083, %v1086
        %v1089 = vmul.u32 %v1084, %v1085
        %v1090 = vmul.u32 %v1084, %v1086
        %v1091 = vshll.u32 %v1088, 16
        %v1092 = vshrl.u32 %v1088, 16
        %v1093 = vshll.u32 %v1089, 16
        %v1094 = vshrl.u32 %v1089, 16
        %vm1095 = vc.u32 %v1087, %v1091
        %v1096 = vsel %vm1095, 1, 0
        %v1097 = vadd.s32 %v1087, %v1091
        %v1098 = vadd.s32 %v1090, %v1096
        %vm1099 = vc.u32 %v1097, %v1093
        %v1100 = vsel %vm1099, 1, 0
        %v1101 = vadd.s32 %v1097, %v1093
        %v1102 = vadd.s32 %v1098, %v1100
        %v1103 = vadd.s32 %v1102, %v1092
        %v1104 = vadd.s32 %v1103, %v1094
        %v1105 = vand.u32 %v1082, 65535
        %v1106 = vshrl.u32 %v1082, 16
        %v1107 = vand.u32 %v1077, 65535
        %v1108 = vshrl.u32 %v1077, 16
        %v1109 = vmul.u32 %v1105, %v1107
        %v1110 = vmul.u32 %v1105, %v1108
        %v1111 = vmul.u32 %v1106, %v1107
        %v1112 = vmul.u32 %v1106, %v1108
        %v1113 = vshll.u32 %v1110, 16
        %v1114 = vshrl.u32 %v1110, 16
        %v1115 = vshll.u32 %v1111, 16
        %v1116 = vshrl.u32 %v1111, 16
        %vm1117 = vc.u32 %v1109, %v1113
        %v1118 = vsel %vm1117, 1, 0
        %v1119 = vadd.s32 %v1109, %v1113
        %v1120 = vadd.s32 %v1112, %v1118
        %vm1121 = vc.u32 %v1119, %v1115
        %v1122 = vsel %vm1121, 1, 0
        %v1123 = vadd.s32 %v1119, %v1115
        %v1124 = vadd.s32 %v1120, %v1122
        %v1125 = vadd.s32 %v1124, %v1114
        %v1126 = vadd.s32 %v1125, %v1116
        %v1127 = vmul.u32 %v1082, %v1073
        %v1128 = vadd.s32 %v1104, %v1123
        %vm1129 = vc.u32 %v1104, %v1123
        %v1130 = vadd.s32 %v1126, 1
        %v1131 = vsel %vm1129, %v1130, %v1126
        %v1132 = vadd.s32 %v1127, %v1131
        %v1133 = vadd.s32 %v1132, 536870912
        %v1134 = vshrl.u32 %v1133, 30
        %v1135 = vshll.u32 %v1134, 30
        %v1136 = vsub.s32 %v1132, %v1135
        %vm1137 = vcmp.lt.s32.totalorder %v1136, 0
        %v1138 = vsub.s32 0, %v1136
        %v1139 = vsel %vm1137, %v1138, %v1136
        %v1140 = vclz %v1139
        %v1141 = vsub.s32 %v1140, 2
        %vm1142 = vcmp.gt.s32.totalorder 0, %v1141
        %v1143 = vsel %vm1142, 0, %v1141
        %v1144 = vsub.s32 32, %v1143
        %v1145 = vshll.u32 %v1136, %v1143
        %v1146 = vshrl.u32 %v1128, %v1144
        %v1147 = vor.u32 %v1145, %v1146
        %v1148 = vsub.s32 4294967266, %v1143
        %v1149 = vadd.s32 %v1148, 127
        %v1150 = vshll.u32 %v1149, 23
        %v1151 = vor.u32 4788187, %v1150
        %v1152 = vand.u32 2147483647, %v1151
        %v1154 = vcvt.s32.f32 %v1147
        %v1155 = vmul.f32 %v1154, %v1152
        %v1156 = vxor.u32 %v1155, 2147483648
        %v1157 = vsel %vm1036, %v1156, %v1155
        %v1158 = vsub.s32 4, %v1134
        %v1159 = vsel %vm1036, %v1158, %v1134
        %v1160 = vsel %vm1035, %v565, %v1157
        %v1161 = vsel %vm1035, 0, %v1159
        %v1162 = vmul.f32 %v1160, %v1160
        %v1163 = vmul.f32 %v1162, -0.001358992
        %v1164 = vadd.f32 %v1163, 0.041655596
        %v1165 = vmul.f32 %v1162, %v1164
        %v1166 = vadd.f32 %v1165, -0.4999988
        %v1167 = vmul.f32 %v1162, %v1166
        %v1168 = vadd.f32 1.0, %v1167
        %v1169 = vmul.f32 %v1160, %v1160
        %v1170 = vmul.f32 %v1169, -0.00019511016
        %v1171 = vadd.f32 %v1170, 0.008332121
        %v1172 = vmul.f32 %v1169, %v1171
        %v1173 = vadd.f32 %v1172, -0.16666654
        %v1174 = vmul.f32 %v1169, %v1173
        %v1175 = vadd.f32 %v1174, 1.0
        %v1176 = vmul.f32 %v1175, %v1160
        %vm1177 = vweird.f32 %v565
        %v1178 = vadd.s32 %v1161, 3
        %v1179 = vand.u32 %v1178, 3
        %vm1180 = vcmp.lt.s32.totalorder %v1179, 2
        %vm1181 = vcmp.eq.s32.totalorder %v1179, 0
        %v1182 = vxor.u32 %v1176, 2147483648
        %v1183 = vsel %vm1181, %v1168, %v1182
        %vm1184 = vcmp.eq.s32.totalorder %v1179, 2
        %v1185 = vxor.u32 %v1168, 2147483648
        %v1186 = vsel %vm1184, %v1185, %v1176
        %v1187 = vsel %vm1180, %v1183, %v1186
        %v1188 = vsel %vm1177, nan, %v1187
        %v1189 = vand.u32 2147483647, %v566
        %vm1190 = vcmp.le.f32.partialorder %v1189, 0.7853982
        %vm1191 = vcmp.lt.s32.totalorder %v566, 0
        %v1192 = vand.u32 %v566, 2139095040
        %v1193 = vshrl.u32 %v1192, 23
        %v1194 = vsub.s32 %v1193, 127
        %v1195 = vand.u32 2147483647, %v566
        %v1196 = vand.u32 %v1195, 8388607
        %v1197 = vor.u32 %v1196, 8388608
        %v1198 = vsub.s32 0, %v1197
        %v1199 = vadd.s32 %v1194, 1
        %vm1200 = vcmp.gt.s32.totalorder %v1199, 0
        %v1201 = vsel %vm1200, %v1199, 0
        %v1202 = vshrl.u32 %v1201, 5
        %v1203 = vand.u32 %v1201, 31
        %v1204 = vsub.s32 32, %v1203
        %v1205 = vshrl.u32 683565275, %v1204
        %v1206 = vshll.u32 683565275, %v1203
        %v1207 = vshrl.u32 2475754826, %v1204
        %v1208 = vor.u32 %v1206, %v1207
        %v1209 = vshll.u32 2475754826, %v1203
        %v1210 = vshrl.u32 2131351028, %v1204
        %v1211 = vor.u32 %v1209, %v1210
        %v1212 = vshll.u32 2131351028, %v1203
        %v1213 = vshrl.u32 2102212464, %v1204
        %v1214 = vor.u32 %v1212, %v1213
        %v1215 = vshll.u32 2102212464, %v1203
        %v1216 = vshrl.u32 920167782, %v1204
        %v1217 = vor.u32 %v1215, %v1216
        %v1218 = vshll.u32 920167782, %v1203
        %v1219 = vshrl.u32 1326507024, %v1204
        %v1220 = vor.u32 %v1218, %v1219
        %vm1221 = vcmp.lt.s32.totalorder %v1202, 1
        %vm1222 = vcmp.lt.s32.totalorder %v1202, 2
        %vm1223 = vcmp.lt.s32.totalorder %v1202, 3
        %vm1224 = vcmp.lt.s32.totalorder %v1202, 4
        %v1225 = vsel %vm1221, %v1205, %v1208
        %v1226 = vsel %vm1224, %v1214, 2102212464
        %v1227 = vsel %vm1223, %v1211, %v1226
        %v1228 = vsel %vm1222, %v1225, %v1227
        %v1229 = vsel %vm1221, %v1208, %v1211
        %v1230 = vsel %vm1224, %v1217, 920167782
        %v1231 = vsel %vm1223, %v1214, %v1230
        %v1232 = vsel %vm1222, %v1229, %v1231
        %v1233 = vsel %vm1221, %v1211, %v1214
        %v1234 = vsel %vm1224, %v1220, 1326507024
        %v1235 = vsel %vm1223, %v1217, %v1234
        %v1236 = vsel %vm1222, %v1233, %v1235
        %v1237 = vshll.u32 %v1197, 8
        %v1238 = vand.u32 %v1237, 65535
        %v1239 = vshrl.u32 %v1237, 16
        %v1240 = vand.u32 %v1236, 65535
        %v1241 = vshrl.u32 %v1236, 16
        %v1242 = vmul.u32 %v1238, %v1240
        %v1243 = vmul.u32 %v1238, %v1241
        %v1244 = vmul.u32 %v1239, %v1240
        %v1245 = vmul.u32 %v1239, %v1241
        %v1246 = vshll.u32 %v1243, 16
        %v1247 = vshrl.u32 %v1243, 16
        %v1248 = vshll.u32 %v1244, 16
        %v1249 = vshrl.u32 %v1244, 16
        %vm1250 = vc.u32 %v1242, %v1246
        %v1251 = vsel %vm1250, 1, 0
        %v1252 = vadd.s32 %v1242, %v1246
        %v1253 = vadd.s32 %v1245, %v1251
        %vm1254 = vc.u32 %v1252, %v1248
        %v1255 = vsel %vm1254, 1, 0
        %v1256 = vadd.s32 %v1252, %v1248
        %v1257 = vadd.s32 %v1253, %v1255
        %v1258 = vadd.s32 %v1257, %v1247
        %v1259 = vadd.s32 %v1258, %v1249
        %v1260 = vand.u32 %v1237, 65535
        %v1261 = vshrl.u32 %v1237, 16
        %v1262 = vand.u32 %v1232, 65535
        %v1263 = vshrl.u32 %v1232, 16
        %v1264 = vmul.u32 %v1260, %v1262
        %v1265 = vmul.u32 %v1260, %v1263
        %v1266 = vmul.u32 %v1261, %v1262
        %v1267 = vmul.u32 %v1261, %v1263
        %v1268 = vshll.u32 %v1265, 16
        %v1269 = vshrl.u32 %v1265, 16
        %v1270 = vshll.u32 %v1266, 16
        %v1271 = vshrl.u32 %v1266, 16
        %vm1272 = vc.u32 %v1264, %v1268
        %v1273 = vsel %vm1272, 1, 0
        %v1274 = vadd.s32 %v1264, %v1268
        %v1275 = vadd.s32 %v1267, %v1273
        %vm1276 = vc.u32 %v1274, %v1270
        %v1277 = vsel %vm1276, 1, 0
        %v1278 = vadd.s32 %v1274, %v1270
        %v1279 = vadd.s32 %v1275, %v1277
        %v1280 = vadd.s32 %v1279, %v1269
        %v1281 = vadd.s32 %v1280, %v1271
        %v1282 = vmul.u32 %v1237, %v1228
        %v1283 = vadd.s32 %v1259, %v1278
        %vm1284 = vc.u32 %v1259, %v1278
        %v1285 = vadd.s32 %v1281, 1
        %v1286 = vsel %vm1284, %v1285, %v1281
        %v1287 = vadd.s32 %v1282, %v1286
        %v1288 = vadd.s32 %v1287, 536870912
        %v1289 = vshrl.u32 %v1288, 30
        %v1290 = vshll.u32 %v1289, 30
        %v1291 = vsub.s32 %v1287, %v1290
        %vm1292 = vcmp.lt.s32.totalorder %v1291, 0
        %v1293 = vsub.s32 0, %v1291
        %v1294 = vsel %vm1292, %v1293, %v1291
        %v1295 = vclz %v1294
        %v1296 = vsub.s32 %v1295, 2
        %vm1297 = vcmp.gt.s32.totalorder 0, %v1296
        %v1298 = vsel %vm1297, 0, %v1296
        %v1299 = vsub.s32 32, %v1298
        %v1300 = vshll.u32 %v1291, %v1298
        %v1301 = vshrl.u32 %v1283, %v1299
        %v1302 = vor.u32 %v1300, %v1301
        %v1303 = vsub.s32 4294967266, %v1298
        %v1304 = vadd.s32 %v1303, 127
        %v1305 = vshll.u32 %v1304, 23
        %v1306 = vor.u32 4788187, %v1305
        %v1307 = vand.u32 2147483647, %v1306
        %v1309 = vcvt.s32.f32 %v1302
        %v1310 = vmul.f32 %v1309, %v1307
        %v1311 = vxor.u32 %v1310, 2147483648
        %v1312 = vsel %vm1191, %v1311, %v1310
        %v1313 = vsub.s32 4, %v1289
        %v1314 = vsel %vm1191, %v1313, %v1289
        %v1315 = vsel %vm1190, %v566, %v1312
        %v1316 = vsel %vm1190, 0, %v1314
        %v1317 = vmul.f32 %v1315, %v1315
        %v1318 = vmul.f32 %v1317, -0.001358992
        %v1319 = vadd.f32 %v1318, 0.041655596
        %v1320 = vmul.f32 %v1317, %v1319
        %v1321 = vadd.f32 %v1320, -0.4999988
        %v1322 = vmul.f32 %v1317, %v1321
        %v1323 = vadd.f32 1.0, %v1322
        %v1324 = vmul.f32 %v1315, %v1315
        %v1325 = vmul.f32 %v1324, -0.00019511016
        %v1326 = vadd.f32 %v1325, 0.008332121
        %v1327 = vmul.f32 %v1324, %v1326
        %v1328 = vadd.f32 %v1327, -0.16666654
        %v1329 = vmul.f32 %v1324, %v1328
        %v1330 = vadd.f32 %v1329, 1.0
        %v1331 = vmul.f32 %v1330, %v1315
        %vm1332 = vweird.f32 %v566
        %v1333 = vadd.s32 %v1316, 3
        %v1334 = vand.u32 %v1333, 3
        %vm1335 = vcmp.lt.s32.totalorder %v1334, 2
        %vm1336 = vcmp.eq.s32.totalorder %v1334, 0
        %v1337 = vxor.u32 %v1331, 2147483648
        %v1338 = vsel %vm1336, %v1323, %v1337
        %vm1339 = vcmp.eq.s32.totalorder %v1334, 2
        %v1340 = vxor.u32 %v1323, 2147483648
        %v1341 = vsel %vm1339, %v1340, %v1331
        %v1342 = vsel %vm1335, %v1338, %v1341
        %v1343 = vsel %vm1332, nan, %v1342
        %v1344 = vand.u32 2147483647, %v567
        %vm1345 = vcmp.le.f32.partialorder %v1344, 0.7853982
        %vm1346 = vcmp.lt.s32.totalorder %v567, 0
        %v1347 = vand.u32 %v567, 2139095040
        %v1348 = vshrl.u32 %v1347, 23
        %v1349 = vsub.s32 %v1348, 127
        %v1350 = vand.u32 2147483647, %v567
        %v1351 = vand.u32 %v1350, 8388607
        %v1352 = vor.u32 %v1351, 8388608
        %v1353 = vsub.s32 0, %v1352
        %v1354 = vadd.s32 %v1349, 1
        %vm1355 = vcmp.gt.s32.totalorder %v1354, 0
        %v1356 = vsel %vm1355, %v1354, 0
        %v1357 = vshrl.u32 %v1356, 5
        %v1358 = vand.u32 %v1356, 31
        %v1359 = vsub.s32 32, %v1358
        %v1360 = vshrl.u32 683565275, %v1359
        %v1361 = vshll.u32 683565275, %v1358
        %v1362 = vshrl.u32 2475754826, %v1359
        %v1363 = vor.u32 %v1361, %v1362
        %v1364 = vshll.u32 2475754826, %v1358
        %v1365 = vshrl.u32 2131351028, %v1359
        %v1366 = vor.u32 %v1364, %v1365
        %v1367 = vshll.u32 2131351028, %v1358
        %v1368 = vshrl.u32 2102212464, %v1359
        %v1369 = vor.u32 %v1367, %v1368
        %v1370 = vshll.u32 2102212464, %v1358
        %v1371 = vshrl.u32 920167782, %v1359
        %v1372 = vor.u32 %v1370, %v1371
        %v1373 = vshll.u32 920167782, %v1358
        %v1374 = vshrl.u32 1326507024, %v1359
        %v1375 = vor.u32 %v1373, %v1374
        %vm1376 = vcmp.lt.s32.totalorder %v1357, 1
        %vm1377 = vcmp.lt.s32.totalorder %v1357, 2
        %vm1378 = vcmp.lt.s32.totalorder %v1357, 3
        %vm1379 = vcmp.lt.s32.totalorder %v1357, 4
        %v1380 = vsel %vm1376, %v1360, %v1363
        %v1381 = vsel %vm1379, %v1369, 2102212464
        %v1382 = vsel %vm1378, %v1366, %v1381
        %v1383 = vsel %vm1377, %v1380, %v1382
        %v1384 = vsel %vm1376, %v1363, %v1366
        %v1385 = vsel %vm1379, %v1372, 920167782
        %v1386 = vsel %vm1378, %v1369, %v1385
        %v1387 = vsel %vm1377, %v1384, %v1386
        %v1388 = vsel %vm1376, %v1366, %v1369
        %v1389 = vsel %vm1379, %v1375, 1326507024
        %v1390 = vsel %vm1378, %v1372, %v1389
        %v1391 = vsel %vm1377, %v1388, %v1390
        %v1392 = vshll.u32 %v1352, 8
        %v1393 = vand.u32 %v1392, 65535
        %v1394 = vshrl.u32 %v1392, 16
        %v1395 = vand.u32 %v1391, 65535
        %v1396 = vshrl.u32 %v1391, 16
        %v1397 = vmul.u32 %v1393, %v1395
        %v1398 = vmul.u32 %v1393, %v1396
        %v1399 = vmul.u32 %v1394, %v1395
        %v1400 = vmul.u32 %v1394, %v1396
        %v1401 = vshll.u32 %v1398, 16
        %v1402 = vshrl.u32 %v1398, 16
        %v1403 = vshll.u32 %v1399, 16
        %v1404 = vshrl.u32 %v1399, 16
        %vm1405 = vc.u32 %v1397, %v1401
        %v1406 = vsel %vm1405, 1, 0
        %v1407 = vadd.s32 %v1397, %v1401
        %v1408 = vadd.s32 %v1400, %v1406
        %vm1409 = vc.u32 %v1407, %v1403
        %v1410 = vsel %vm1409, 1, 0
        %v1411 = vadd.s32 %v1407, %v1403
        %v1412 = vadd.s32 %v1408, %v1410
        %v1413 = vadd.s32 %v1412, %v1402
        %v1414 = vadd.s32 %v1413, %v1404
        %v1415 = vand.u32 %v1392, 65535
        %v1416 = vshrl.u32 %v1392, 16
        %v1417 = vand.u32 %v1387, 65535
        %v1418 = vshrl.u32 %v1387, 16
        %v1419 = vmul.u32 %v1415, %v1417
        %v1420 = vmul.u32 %v1415, %v1418
        %v1421 = vmul.u32 %v1416, %v1417
        %v1422 = vmul.u32 %v1416, %v1418
        %v1423 = vshll.u32 %v1420, 16
        %v1424 = vshrl.u32 %v1420, 16
        %v1425 = vshll.u32 %v1421, 16
        %v1426 = vshrl.u32 %v1421, 16
        %vm1427 = vc.u32 %v1419, %v1423
        %v1428 = vsel %vm1427, 1, 0
        %v1429 = vadd.s32 %v1419, %v1423
        %v1430 = vadd.s32 %v1422, %v1428
        %vm1431 = vc.u32 %v1429, %v1425
        %v1432 = vsel %vm1431, 1, 0
        %v1433 = vadd.s32 %v1429, %v1425
        %v1434 = vadd.s32 %v1430, %v1432
        %v1435 = vadd.s32 %v1434, %v1424
        %v1436 = vadd.s32 %v1435, %v1426
        %v1437 = vmul.u32 %v1392, %v1383
        %v1438 = vadd.s32 %v1414, %v1433
        %vm1439 = vc.u32 %v1414, %v1433
        %v1440 = vadd.s32 %v1436, 1
        %v1441 = vsel %vm1439, %v1440, %v1436
        %v1442 = vadd.s32 %v1437, %v1441
        %v1443 = vadd.s32 %v1442, 536870912
        %v1444 = vshrl.u32 %v1443, 30
        %v1445 = vshll.u32 %v1444, 30
        %v1446 = vsub.s32 %v1442, %v1445
        %vm1447 = vcmp.lt.s32.totalorder %v1446, 0
        %v1448 = vsub.s32 0, %v1446
        %v1449 = vsel %vm1447, %v1448, %v1446
        %v1450 = vclz %v1449
        %v1451 = vsub.s32 %v1450, 2
        %vm1452 = vcmp.gt.s32.totalorder 0, %v1451
        %v1453 = vsel %vm1452, 0, %v1451
        %v1454 = vsub.s32 32, %v1453
        %v1455 = vshll.u32 %v1446, %v1453
        %v1456 = vshrl.u32 %v1438, %v1454
        %v1457 = vor.u32 %v1455, %v1456
        %v1458 = vsub.s32 4294967266, %v1453
        %v1459 = vadd.s32 %v1458, 127
        %v1460 = vshll.u32 %v1459, 23
        %v1461 = vor.u32 4788187, %v1460
        %v1462 = vand.u32 2147483647, %v1461
        %v1464 = vcvt.s32.f32 %v1457
        %v1465 = vmul.f32 %v1464, %v1462
        %v1466 = vxor.u32 %v1465, 2147483648
        %v1467 = vsel %vm1346, %v1466, %v1465
        %v1468 = vsub.s32 4, %v1444
        %v1469 = vsel %vm1346, %v1468, %v1444
        %v1470 = vsel %vm1345, %v567, %v1467
        %v1471 = vsel %vm1345, 0, %v1469
        %v1472 = vmul.f32 %v1470, %v1470
        %v1473 = vmul.f32 %v1472, -0.001358992
        %v1474 = vadd.f32 %v1473, 0.041655596
        %v1475 = vmul.f32 %v1472, %v1474
        %v1476 = vadd.f32 %v1475, -0.4999988
        %v1477 = vmul.f32 %v1472, %v1476
        %v1478 = vadd.f32 1.0, %v1477
        %v1479 = vmul.f32 %v1470, %v1470
        %v1480 = vmul.f32 %v1479, -0.00019511016
        %v1481 = vadd.f32 %v1480, 0.008332121
        %v1482 = vmul.f32 %v1479, %v1481
        %v1483 = vadd.f32 %v1482, -0.16666654
        %v1484 = vmul.f32 %v1479, %v1483
        %v1485 = vadd.f32 %v1484, 1.0
        %v1486 = vmul.f32 %v1485, %v1470
        %vm1487 = vweird.f32 %v567
        %v1488 = vadd.s32 %v1471, 3
        %v1489 = vand.u32 %v1488, 3
        %vm1490 = vcmp.lt.s32.totalorder %v1489, 2
        %vm1491 = vcmp.eq.s32.totalorder %v1489, 0
        %v1492 = vxor.u32 %v1486, 2147483648
        %v1493 = vsel %vm1491, %v1478, %v1492
        %vm1494 = vcmp.eq.s32.totalorder %v1489, 2
        %v1495 = vxor.u32 %v1478, 2147483648
        %v1496 = vsel %vm1494, %v1495, %v1486
        %v1497 = vsel %vm1490, %v1493, %v1496
        %v1498 = vsel %vm1487, nan, %v1497
        %v1499 = vand.u32 2147483647, %v568
        %vm1500 = vcmp.le.f32.partialorder %v1499, 0.7853982
        %vm1501 = vcmp.lt.s32.totalorder %v568, 0
        %v1502 = vand.u32 %v568, 2139095040
        %v1503 = vshrl.u32 %v1502, 23
        %v1504 = vsub.s32 %v1503, 127
        %v1505 = vand.u32 2147483647, %v568
        %v1506 = vand.u32 %v1505, 8388607
        %v1507 = vor.u32 %v1506, 8388608
        %v1508 = vsub.s32 0, %v1507
        %v1509 = vadd.s32 %v1504, 1
        %vm1510 = vcmp.gt.s32.totalorder %v1509, 0
        %v1511 = vsel %vm1510, %v1509, 0
        %v1512 = vshrl.u32 %v1511, 5
        %v1513 = vand.u32 %v1511, 31
        %v1514 = vsub.s32 32, %v1513
        %v1515 = vshrl.u32 683565275, %v1514
        %v1516 = vshll.u32 683565275, %v1513
        %v1517 = vshrl.u32 2475754826, %v1514
        %v1518 = vor.u32 %v1516, %v1517
        %v1519 = vshll.u32 2475754826, %v1513
        %v1520 = vshrl.u32 2131351028, %v1514
        %v1521 = vor.u32 %v1519, %v1520
        %v1522 = vshll.u32 2131351028, %v1513
        %v1523 = vshrl.u32 2102212464, %v1514
        %v1524 = vor.u32 %v1522, %v1523
        %v1525 = vshll.u32 2102212464, %v1513
        %v1526 = vshrl.u32 920167782, %v1514
        %v1527 = vor.u32 %v1525, %v1526
        %v1528 = vshll.u32 920167782, %v1513
        %v1529 = vshrl.u32 1326507024, %v1514
        %v1530 = vor.u32 %v1528, %v1529
        %vm1531 = vcmp.lt.s32.totalorder %v1512, 1
        %vm1532 = vcmp.lt.s32.totalorder %v1512, 2
        %vm1533 = vcmp.lt.s32.totalorder %v1512, 3
        %vm1534 = vcmp.lt.s32.totalorder %v1512, 4
        %v1535 = vsel %vm1531, %v1515, %v1518
        %v1536 = vsel %vm1534, %v1524, 2102212464
        %v1537 = vsel %vm1533, %v1521, %v1536
        %v1538 = vsel %vm1532, %v1535, %v1537
        %v1539 = vsel %vm1531, %v1518, %v1521
        %v1540 = vsel %vm1534, %v1527, 920167782
        %v1541 = vsel %vm1533, %v1524, %v1540
        %v1542 = vsel %vm1532, %v1539, %v1541
        %v1543 = vsel %vm1531, %v1521, %v1524
        %v1544 = vsel %vm1534, %v1530, 1326507024
        %v1545 = vsel %vm1533, %v1527, %v1544
        %v1546 = vsel %vm1532, %v1543, %v1545
        %v1547 = vshll.u32 %v1507, 8
        %v1548 = vand.u32 %v1547, 65535
        %v1549 = vshrl.u32 %v1547, 16
        %v1550 = vand.u32 %v1546, 65535
        %v1551 = vshrl.u32 %v1546, 16
        %v1552 = vmul.u32 %v1548, %v1550
        %v1553 = vmul.u32 %v1548, %v1551
        %v1554 = vmul.u32 %v1549, %v1550
        %v1555 = vmul.u32 %v1549, %v1551
        %v1556 = vshll.u32 %v1553, 16
        %v1557 = vshrl.u32 %v1553, 16
        %v1558 = vshll.u32 %v1554, 16
        %v1559 = vshrl.u32 %v1554, 16
        %vm1560 = vc.u32 %v1552, %v1556
        %v1561 = vsel %vm1560, 1, 0
        %v1562 = vadd.s32 %v1552, %v1556
        %v1563 = vadd.s32 %v1555, %v1561
        %vm1564 = vc.u32 %v1562, %v1558
        %v1565 = vsel %vm1564, 1, 0
        %v1566 = vadd.s32 %v1562, %v1558
        %v1567 = vadd.s32 %v1563, %v1565
        %v1568 = vadd.s32 %v1567, %v1557
        %v1569 = vadd.s32 %v1568, %v1559
        %v1570 = vand.u32 %v1547, 65535
        %v1571 = vshrl.u32 %v1547, 16
        %v1572 = vand.u32 %v1542, 65535
        %v1573 = vshrl.u32 %v1542, 16
        %v1574 = vmul.u32 %v1570, %v1572
        %v1575 = vmul.u32 %v1570, %v1573
        %v1576 = vmul.u32 %v1571, %v1572
        %v1577 = vmul.u32 %v1571, %v1573
        %v1578 = vshll.u32 %v1575, 16
        %v1579 = vshrl.u32 %v1575, 16
        %v1580 = vshll.u32 %v1576, 16
        %v1581 = vshrl.u32 %v1576, 16
        %vm1582 = vc.u32 %v1574, %v1578
        %v1583 = vsel %vm1582, 1, 0
        %v1584 = vadd.s32 %v1574, %v1578
        %v1585 = vadd.s32 %v1577, %v1583
        %vm1586 = vc.u32 %v1584, %v1580
        %v1587 = vsel %vm1586, 1, 0
        %v1588 = vadd.s32 %v1584, %v1580
        %v1589 = vadd.s32 %v1585, %v1587
        %v1590 = vadd.s32 %v1589, %v1579
        %v1591 = vadd.s32 %v1590, %v1581
        %v1592 = vmul.u32 %v1547, %v1538
        %v1593 = vadd.s32 %v1569, %v1588
        %vm1594 = vc.u32 %v1569, %v1588
        %v1595 = vadd.s32 %v1591, 1
        %v1596 = vsel %vm1594, %v1595, %v1591
        %v1597 = vadd.s32 %v1592, %v1596
        %v1598 = vadd.s32 %v1597, 536870912
        %v1599 = vshrl.u32 %v1598, 30
        %v1600 = vshll.u32 %v1599, 30
        %v1601 = vsub.s32 %v1597, %v1600
        %vm1602 = vcmp.lt.s32.totalorder %v1601, 0
        %v1603 = vsub.s32 0, %v1601
        %v1604 = vsel %vm1602, %v1603, %v1601
        %v1605 = vclz %v1604
        %v1606 = vsub.s32 %v1605, 2
        %vm1607 = vcmp.gt.s32.totalorder 0, %v1606
        %v1608 = vsel %vm1607, 0, %v1606
        %v1609 = vsub.s32 32, %v1608
        %v1610 = vshll.u32 %v1601, %v1608
        %v1611 = vshrl.u32 %v1593, %v1609
        %v1612 = vor.u32 %v1610, %v1611
        %v1613 = vsub.s32 4294967266, %v1608
        %v1614 = vadd.s32 %v1613, 127
        %v1615 = vshll.u32 %v1614, 23
        %v1616 = vor.u32 4788187, %v1615
        %v1617 = vand.u32 2147483647, %v1616
        %v1619 = vcvt.s32.f32 %v1612
        %v1620 = vmul.f32 %v1619, %v1617
        %v1621 = vxor.u32 %v1620, 2147483648
        %v1622 = vsel %vm1501, %v1621, %v1620
        %v1623 = vsub.s32 4, %v1599
        %v1624 = vsel %vm1501, %v1623, %v1599
        %v1625 = vsel %vm1500, %v568, %v1622
        %v1626 = vsel %vm1500, 0, %v1624
        %v1627 = vmul.f32 %v1625, %v1625
        %v1628 = vmul.f32 %v1627, -0.001358992
        %v1629 = vadd.f32 %v1628, 0.041655596
        %v1630 = vmul.f32 %v1627, %v1629
        %v1631 = vadd.f32 %v1630, -0.4999988
        %v1632 = vmul.f32 %v1627, %v1631
        %v1633 = vadd.f32 1.0, %v1632
        %v1634 = vmul.f32 %v1625, %v1625
        %v1635 = vmul.f32 %v1634, -0.00019511016
        %v1636 = vadd.f32 %v1635, 0.008332121
        %v1637 = vmul.f32 %v1634, %v1636
        %v1638 = vadd.f32 %v1637, -0.16666654
        %v1639 = vmul.f32 %v1634, %v1638
        %v1640 = vadd.f32 %v1639, 1.0
        %v1641 = vmul.f32 %v1640, %v1625
        %vm1642 = vweird.f32 %v568
        %v1643 = vadd.s32 %v1626, 3
        %v1644 = vand.u32 %v1643, 3
        %vm1645 = vcmp.lt.s32.totalorder %v1644, 2
        %vm1646 = vcmp.eq.s32.totalorder %v1644, 0
        %v1647 = vxor.u32 %v1641, 2147483648
        %v1648 = vsel %vm1646, %v1633, %v1647
        %vm1649 = vcmp.eq.s32.totalorder %v1644, 2
        %v1650 = vxor.u32 %v1633, 2147483648
        %v1651 = vsel %vm1649, %v1650, %v1641
        %v1652 = vsel %vm1645, %v1648, %v1651
        %v1653 = vsel %vm1642, nan, %v1652
        %vm1654 = vcmask 261120
        %1655 = vst.msk [vmem:[%s172] sm:$0xff] %vm1654, %v723
        %1656 = vst.msk [vmem:[%s172 + $0x8] sm:$0xff] %vm1654, %v878
        %1657 = vst.msk [vmem:[%s172 + $0x10] sm:$0xff] %vm1654, %v1033
        %1658 = vst.msk [vmem:[%s172 + $0x18] sm:$0xff] %vm1654, %v1188
        %1659 = vst.msk [vmem:[%s172 + $0x20] sm:$0xff] %vm1654, %v1343
        %1660 = vst.msk [vmem:[%s172 + $0x28] sm:$0xff] %vm1654, %v1498
        %1661 = vst.msk [vmem:[%s172 + $0x30] sm:$0xff] %vm1654, %v1653
        %s1662 = sand.u32 %s90, 1
        %s1663 = sand.u32 %s90, 1
        %s1664 = smul.addr %s1663, 56
        %s1665 = scalar_lea.vmem [#allocation2], %s1664
        // Predicated region
        $region33: #{tpu_custom_call.1} parent=31 // pred_check
          %p1666 = pneg %p100
        $region34: #{tpu_custom_call.1} parent=31 // pred_check_branch
          %1668 = sbr.rel (%p1666) target = $region36
        $region35: #{tpu_custom_call.1} parent=31 // pred_region
          %s1669 = smul.u32 7, %s14
          %s1670 = ssub.s32 25, %s1669
          %p1671 = scmp.lt.s32.totalorder %s1670, 7
          %s1672 = scalar_select %p1671, %s1670, 7
          %s1673 = smul.u32 8, %s1672
          %p1674 = scmp.ne.s32.totalorder 0, %s1673
          %s1675 = smul.addr %s1669, 8
          %s1676 = scalar_lea.vmem %s3, %s1675
          // Predicated region
          $region37: #{tpu_custom_call.1} parent=35 // pred_check
            %p1677 = pneg %p1674
          $region38: #{tpu_custom_call.1} parent=35 // pred_check_branch
            %1679 = sbr.rel (%p1677) target = $region40
          $region39: #{tpu_custom_call.1} parent=35 // pred_region
            // Predicated region
            $region41: #{tpu_custom_call.1} parent=39 // pred_check
              _
            $region42: #{tpu_custom_call.1} parent=39 // pred_check_branch
              %1681 = sbr.rel (0) target = $region44
            $region43: #{tpu_custom_call.1} parent=39 // pred_region
              // Predicated region
              $region63: #{tpu_custom_call.1} parent=43 // pred_check
                _
              $region64: #{tpu_custom_call.1} parent=43 // pred_check_branch
                %1744 = sbr.rel (0) target = $region66
              $region65: #{tpu_custom_call.1} parent=43 // pred_region
                %s1745 = sdiv.u32.pop %s1672, 7
                %s1746 = srem.u32.pop %s1672, 7
                // While loop
                $region67: #{tpu_custom_call.1} parent=65 // loop_pre_header
                  _
                $region68: #{tpu_custom_call.1} parent=65 // loop_header
                  %s1748 = sphi 0, %s1750
                  %p1749 = scmp.ge.s32.totalorder %s1748, %s1745
                  %s1753 = sphi 0, %s1772
                  %s1754 = sphi %s1665, %s1775
                  %s1755 = sphi %s1676, %s1776
                $region69: #{tpu_custom_call.1} parent=65 // loop_header_branch
                  %1752 = sbr.rel (%p1749) target = $region73
                $region70: #{tpu_custom_call.1} parent=65 // loop_body
                  %v1756 = vld [vmem:[%s1754] sm:$0xff]
                  %1757 = vst [vmem:[%s1755] sm:$0xff] %v1756
                  %v1758 = vld [vmem:[%s1754 + $0x8] sm:$0xff]
                  %1759 = vst [vmem:[%s1755 + $0x8] sm:$0xff] %v1758
                  %v1760 = vld [vmem:[%s1754 + $0x10] sm:$0xff]
                  %1761 = vst [vmem:[%s1755 + $0x10] sm:$0xff] %v1760
                  %v1762 = vld [vmem:[%s1754 + $0x18] sm:$0xff]
                  %1763 = vst [vmem:[%s1755 + $0x18] sm:$0xff] %v1762
                  %v1764 = vld [vmem:[%s1754 + $0x20] sm:$0xff]
                  %1765 = vst [vmem:[%s1755 + $0x20] sm:$0xff] %v1764
                  %v1766 = vld [vmem:[%s1754 + $0x28] sm:$0xff]
                  %1767 = vst [vmem:[%s1755 + $0x28] sm:$0xff] %v1766
                  %v1768 = vld [vmem:[%s1754 + $0x30] sm:$0xff]
                  %1769 = vst [vmem:[%s1755 + $0x30] sm:$0xff] %v1768
                  %s1770 = sadd.s32 1, %s1753
                  %p1771 = scmp.ge.s32.totalorder %s1770, %s1745
                  %s1772 = scalar_select %p1771, 0, %s1770
                  %s1773 = smul.u32 %s1772, 56
                  %s1774 = smul.u32 %s1772, 56
                  %s1775 = scalar_lea.vmem %s1665, %s1773 [#allocation2]
                  %s1776 = scalar_lea.vmem %s1676, %s1774
                $region71: #{tpu_custom_call.1} parent=65 // loop_footer
                  %s1750 = sadd.s32 %s1748, 1
                $region72: #{tpu_custom_call.1} parent=65 // loop_footer_branch
                  %1747 = sbr.rel target = $region68
                $region73: #{tpu_custom_call.1} parent=65 // loop_exit
                  _
                %s1777 = sdiv.u32.pop %s1672, 7
                %s1778 = srem.u32.pop %s1672, 7
                %s1779 = smul.u32 %s1777, 7
                %s1780 = smul.u32 8, %s1779
                %s1781 = scalar_lea.vmem %s1665, %s1780 [#allocation2]
                %s1782 = smul.u32 8, %s1779
                %s1783 = scalar_lea.vmem %s1676, %s1782
                // While loop
                $region74: #{tpu_custom_call.1} parent=65 // loop_pre_header
                  _
                $region75: #{tpu_custom_call.1} parent=65 // loop_header
                  %s1785 = sphi 0, %s1787
                  %p1786 = scmp.ge.s32.totalorder %s1785, %s1778
                  %s1790 = sphi 0, %s1797
                  %s1791 = sphi %s1781, %s1800
                  %s1792 = sphi %s1783, %s1801
                $region76: #{tpu_custom_call.1} parent=65 // loop_header_branch
                  %1789 = sbr.rel (%p1786) target = $region80
                $region77: #{tpu_custom_call.1} parent=65 // loop_body
                  %v1793 = vld [vmem:[%s1791] sm:$0xff]
                  %1794 = vst [vmem:[%s1792] sm:$0xff] %v1793
                  %s1795 = sadd.s32 1, %s1790
                  %p1796 = scmp.ge.s32.totalorder %s1795, %s1778
                  %s1797 = scalar_select %p1796, 0, %s1795
                  %s1798 = smul.u32 %s1797, 8
                  %s1799 = smul.u32 %s1797, 8
                  %s1800 = scalar_lea.vmem %s1781, %s1798 [#allocation2]
                  %s1801 = scalar_lea.vmem %s1783, %s1799
                $region78: #{tpu_custom_call.1} parent=65 // loop_footer
                  %s1787 = sadd.s32 %s1785, 1
                $region79: #{tpu_custom_call.1} parent=65 // loop_footer_branch
                  %1784 = sbr.rel target = $region75
                $region80: #{tpu_custom_call.1} parent=65 // loop_exit
                  _
              $region66: #{tpu_custom_call.1} parent=43 // pred_fallthru
                _
              // Predicated region
              $region81: #{tpu_custom_call.1} parent=43 // pred_check
                _
              $region82: #{tpu_custom_call.1} parent=43 // pred_check_branch
                %1803 = sbr.rel target = $region84
              $region83: #{tpu_custom_call.1} parent=43 // pred_region
                _
              $region84: #{tpu_custom_call.1} parent=43 // pred_fallthru
                _
            $region44: #{tpu_custom_call.1} parent=39 // pred_fallthru
              _
            // Predicated region
            $region45: #{tpu_custom_call.1} parent=39 // pred_check
              _
            $region46: #{tpu_custom_call.1} parent=39 // pred_check_branch
              %1683 = sbr.rel target = $region48
            $region47: #{tpu_custom_call.1} parent=39 // pred_region
              %s1685 = ssub.s32 256, 1
              %s1686 = sdiv.u32.pop %s1672, 7
              %s1687 = srem.u32.pop %s1672, 7
              // While loop
              $region49: #{tpu_custom_call.1} parent=47 // loop_pre_header
                _
              $region50: #{tpu_custom_call.1} parent=47 // loop_header
                %s1689 = sphi 0, %s1691
                %p1690 = scmp.ge.s32.totalorder %s1689, %s1686
                %s1694 = sphi 0, %s1713
                %s1695 = sphi %s1665, %s1716
                %s1696 = sphi %s1676, %s1717
              $region51: #{tpu_custom_call.1} parent=47 // loop_header_branch
                %1693 = sbr.rel (%p1690) target = $region55
              $region52: #{tpu_custom_call.1} parent=47 // loop_body
                %v1697 = vld [vmem:[%s1695] sm:%s1685]
                %1698 = vst [vmem:[%s1696] sm:%s1685] %v1697
                %v1699 = vld [vmem:[%s1695 + $0x8] sm:%s1685]
                %1700 = vst [vmem:[%s1696 + $0x8] sm:%s1685] %v1699
                %v1701 = vld [vmem:[%s1695 + $0x10] sm:%s1685]
                %1702 = vst [vmem:[%s1696 + $0x10] sm:%s1685] %v1701
                %v1703 = vld [vmem:[%s1695 + $0x18] sm:%s1685]
                %1704 = vst [vmem:[%s1696 + $0x18] sm:%s1685] %v1703
                %v1705 = vld [vmem:[%s1695 + $0x20] sm:%s1685]
                %1706 = vst [vmem:[%s1696 + $0x20] sm:%s1685] %v1705
                %v1707 = vld [vmem:[%s1695 + $0x28] sm:%s1685]
                %1708 = vst [vmem:[%s1696 + $0x28] sm:%s1685] %v1707
                %v1709 = vld [vmem:[%s1695 + $0x30] sm:%s1685]
                %1710 = vst [vmem:[%s1696 + $0x30] sm:%s1685] %v1709
                %s1711 = sadd.s32 1, %s1694
                %p1712 = scmp.ge.s32.totalorder %s1711, %s1686
                %s1713 = scalar_select %p1712, 0, %s1711
                %s1714 = smul.u32 %s1713, 56
                %s1715 = smul.u32 %s1713, 56
                %s1716 = scalar_lea.vmem %s1665, %s1714 [#allocation2]
                %s1717 = scalar_lea.vmem %s1676, %s1715
              $region53: #{tpu_custom_call.1} parent=47 // loop_footer
                %s1691 = sadd.s32 %s1689, 1
              $region54: #{tpu_custom_call.1} parent=47 // loop_footer_branch
                %1688 = sbr.rel target = $region50
              $region55: #{tpu_custom_call.1} parent=47 // loop_exit
                _
              %s1718 = sdiv.u32.pop %s1672, 7
              %s1719 = srem.u32.pop %s1672, 7
              %s1720 = smul.u32 %s1718, 7
              %s1721 = smul.u32 8, %s1720
              %s1722 = scalar_lea.vmem %s1665, %s1721 [#allocation2]
              %s1723 = smul.u32 8, %s1720
              %s1724 = scalar_lea.vmem %s1676, %s1723
              // While loop
              $region56: #{tpu_custom_call.1} parent=47 // loop_pre_header
                _
              $region57: #{tpu_custom_call.1} parent=47 // loop_header
                %s1726 = sphi 0, %s1728
                %p1727 = scmp.ge.s32.totalorder %s1726, %s1719
                %s1731 = sphi 0, %s1738
                %s1732 = sphi %s1722, %s1741
                %s1733 = sphi %s1724, %s1742
              $region58: #{tpu_custom_call.1} parent=47 // loop_header_branch
                %1730 = sbr.rel (%p1727) target = $region62
              $region59: #{tpu_custom_call.1} parent=47 // loop_body
                %v1734 = vld [vmem:[%s1732] sm:%s1685]
                %1735 = vst [vmem:[%s1733] sm:%s1685] %v1734
                %s1736 = sadd.s32 1, %s1731
                %p1737 = scmp.ge.s32.totalorder %s1736, %s1719
                %s1738 = scalar_select %p1737, 0, %s1736
                %s1739 = smul.u32 %s1738, 8
                %s1740 = smul.u32 %s1738, 8
                %s1741 = scalar_lea.vmem %s1722, %s1739 [#allocation2]
                %s1742 = scalar_lea.vmem %s1724, %s1740
              $region60: #{tpu_custom_call.1} parent=47 // loop_footer
                %s1728 = sadd.s32 %s1726, 1
              $region61: #{tpu_custom_call.1} parent=47 // loop_footer_branch
                %1725 = sbr.rel target = $region57
              $region62: #{tpu_custom_call.1} parent=47 // loop_exit
                _
            $region48: #{tpu_custom_call.1} parent=39 // pred_fallthru
              _
          $region40: #{tpu_custom_call.1} parent=35 // pred_fallthru
            _
          %1804 = vnop
        $region36: #{tpu_custom_call.1} parent=31 // pred_fallthru
          _
      $region32: #{tpu_custom_call.1} parent=5 // pred_fallthru
        _
      %p1805 = scmp.le.s32.totalorder 2, %s9
      // Predicated region
      $region85: #{tpu_custom_call.1} parent=5 // pred_check
        %p1806 = pneg %p1805
      $region86: #{tpu_custom_call.1} parent=5 // pred_check_branch
        %1808 = sbr.rel (%p1806) target = $region88
      $region87: #{tpu_custom_call.1} parent=5 // pred_region
        %s1809 = ssub.s32 %s9, 2
        // Predicated region
        $region89: #{tpu_custom_call.1} parent=87 // pred_check
          %p1810 = pneg %p106
        $region90: #{tpu_custom_call.1} parent=87 // pred_check_branch
          %1812 = sbr.rel (%p1810) target = $region92
        $region91: #{tpu_custom_call.1} parent=87 // pred_region
          %s1813 = sand.u32 %s91, 1
          %s1814 = sand.u32 %s91, 1
          %s1815 = smul.addr %s1814, 56
          %s1816 = scalar_lea.vmem [#allocation2], %s1815
        $region92: #{tpu_custom_call.1} parent=87 // pred_fallthru
          _
      $region88: #{tpu_custom_call.1} parent=5 // pred_fallthru
        _
    $region6: #{tpu_custom_call.1} parent=1 // loop_footer
      %s13 = sadd.s32 1, %s9
    $region7: #{tpu_custom_call.1} parent=1 // loop_footer_branch
      %8 = sbr.rel target = $region3
    $region8: #{tpu_custom_call.1} parent=1 // loop_exit
      _

</llo_original>
